<compile_context>
chip_gen: v7x
topology: tpu7x:2x2x1
jax: 0.10.0
libtpu: 0.0.40
codegen_flags: <defaults>
</compile_context>

<pallas_src>
import jax
import jax.numpy as jnp
from jax import lax
from jax.experimental import pallas as pl
from jax.experimental.pallas import tpu as pltpu

EPS = 1e-5
NEG_SLOPE = 0.2
NCORES = 2                        # phase-1 megacore split (no-op on 1-TC chips)
TM_PACKED = 2048                  # max packed rows per tile
TILE_BYTES = 8 * 1024 * 1024      # per-buffer cap for the patch tile (x2 for double-buffer)
VMEM_LIMIT = 40 * 1024 * 1024     # scoped VMEM budget: fits v7x (64 MiB), ample on v5e/v6e


def _round_up(a, b):
    return -(-a // b) * b


def _target_lanes():
    """Packed output width: 256 fills the 256-wide MXU on v6e/v7x; 128 matches v5e."""
    try:
        kind = jax.devices()[0].device_kind.lower()
    except Exception:
        return 256
    return 128 if any(t in kind for t in ("v2", "v3", "v4", "v5")) else 256


def _stats_kernel(p_ref, w_ref, y_ref, s_ref, sq_ref):
    """Phase 1: y = P @ W (written out as bf16) + per-lane sum / sum-of-squares."""
    @pl.when(pl.program_id(1) == 0)
    def _init():
        s_ref[...] = jnp.zeros_like(s_ref)
        sq_ref[...] = jnp.zeros_like(sq_ref)

    y = jnp.dot(p_ref[...], w_ref[...], preferred_element_type=jnp.float32)
    y_ref[...] = y.astype(y_ref.dtype)
    s_ref[...] += jnp.sum(y, axis=0, keepdims=True).reshape(s_ref.shape)
    sq_ref[...] += jnp.sum(y * y, axis=0, keepdims=True).reshape(sq_ref.shape)


def _apply_kernel(y_ref, scale_ref, shift_ref, o_ref):
    """Phase 2 (elementwise only): folded BN affine (y*scale + shift) + LeakyReLU(0.2)."""
    z = y_ref[...].astype(jnp.float32) * scale_ref[...] + shift_ref[...]
    o_ref[...] = jnp.where(z >= 0, z, NEG_SLOPE * z).astype(o_ref.dtype)


def blocks_forward(x_nchw, conv_w, conv_b, bn_gamma, bn_beta,
                   *, compute_dtype=jnp.bfloat16):
    """x_nchw: (N, Cin, H, W) f32. conv_w: (Cout, Cin, 3, 3). Returns (N, Cout, H/2, W/2)."""
    N, Cin, H, W = x_nchw.shape
    Cout = conv_w.shape[0]
    Hout = (H + 2 - 3) // 2 + 1
    Wout = (W + 2 - 3) // 2 + 1
    M = N * Hout * Wout
    K = 9 * Cin
    itemsize = jnp.dtype(compute_dtype).itemsize

    # Conv bias cancels exactly against the mean subtraction of training-mode BN.
    del conv_b

    # ---- glue: im2col in bf16 (NCHW -> NHWC, pad=1, stride=2, k=3), same jit ----
    x = jnp.transpose(x_nchw.astype(compute_dtype), (0, 2, 3, 1))        # NHWC, bf16
    x_pad = jnp.pad(x, ((0, 0), (1, 1), (1, 1), (0, 0)))
    cols = []
    for ky in range(3):
        for kx in range(3):
            cols.append(x_pad[:, ky:ky + 2 * Hout:2, kx:kx + 2 * Wout:2, :])
    patches = jnp.concatenate(cols, axis=-1).reshape(M, K)              # (M, 9*Cin) bf16

    # weight matrix: row (ky*3+kx)*Cin + ci  ->  conv_w[co, ci, ky, kx]
    w_mat = jnp.transpose(conv_w, (2, 3, 1, 0)).reshape(K, Cout)

    # ---- lane packing: fold `pack` output rows into the lane dim (no HBM channel pad) ----
    tl = _target_lanes()
    if Cout % 128 == 0:
        pack = 1                          # already lane-dense
    elif tl % Cout == 0:
        pack = tl // Cout                 # Cp = 256 on v6e/v7x, 128 on v5e
    elif 128 % Cout == 0:
        pack = 128 // Cout
    else:
        pack = 1                          # fallback: masked (partial-lane) stores
    Kp = pack * K                         # packed contraction dim
    Cp = pack * Cout                      # packed output lanes

    mp = -(-M // pack)                                        # packed rows covering M
    tm_cap = max(8, (TILE_BYTES // (Kp * itemsize)) // 8 * 8)
    tm_target = min(TM_PACKED, tm_cap)
    n_tiles = NCORES * max(1, -(-mp // (NCORES * tm_target)))
    tm = _round_up(-(-mp // n_tiles), 8)                      # packed rows per tile
    mp_pad = n_tiles * tm
    gpc = n_tiles // NCORES                                   # phase-1 steps per core
    grid_m = n_tiles                                          # phase-2 steps
    m_pad = mp_pad * pack

    # Zero-padded rows contribute 0 to sum/sumsq (bias dropped), so stats stay exact.
    patches = jnp.pad(patches, ((0, m_pad - M), (0, 0)))
    p_packed = patches.reshape(mp_pad, Kp)
    # block-diagonal weight: kron(I_pack, W) -> (pack*K, pack*Cout)
    w_bd = jnp.kron(jnp.eye(pack, dtype=jnp.float32), w_mat).astype(compute_dtype)

    flops = 2 * mp_pad * Kp * Cp
    p_bytes = mp_pad * Kp * itemsize
    w_bytes = Kp * Cp * itemsize
    y_bytes = mp_pad * Cp * itemsize

    # ---- phase 1: conv matmul + per-channel sum / sumsq (megacore-split stats) ----
    y_packed, sums, sumsqs = pl.pallas_call(
        _stats_kernel,
        grid=(NCORES, gpc),
        in_specs=[
            pl.BlockSpec((tm, Kp), lambda c, i: (c * gpc + i, 0)),
            pl.BlockSpec((Kp, Cp), lambda c, i: (0, 0)),
        ],
        out_specs=(
            pl.BlockSpec((tm, Cp), lambda c, i: (c * gpc + i, 0)),
            pl.BlockSpec((1, 1, Cp), lambda c, i: (c, 0, 0)),
            pl.BlockSpec((1, 1, Cp), lambda c, i: (c, 0, 0)),
        ),
        out_shape=(
            jax.ShapeDtypeStruct((mp_pad, Cp), compute_dtype),
            jax.ShapeDtypeStruct((NCORES, 1, Cp), jnp.float32),
            jax.ShapeDtypeStruct((NCORES, 1, Cp), jnp.float32),
        ),
        compiler_params=pltpu.CompilerParams(
            dimension_semantics=("parallel", "arbitrary"),
            vmem_limit_bytes=VMEM_LIMIT),
        cost_estimate=pl.CostEstimate(
            flops=flops, transcendentals=0,
            bytes_accessed=p_bytes + w_bytes + y_bytes + 2 * NCORES * Cp * 4),
    )(p_packed, w_bd)

    # ---- finalize BN stats (tiny, fused by XLA); fold affine into one scale/shift ----
    # NOTE: E[y^2]-E[y]^2 in f32; clamp guards tiny negative residue from cancellation.
    s_c = jnp.sum(sums.reshape(NCORES * pack, Cout), axis=0)
    sq_c = jnp.sum(sumsqs.reshape(NCORES * pack, Cout), axis=0)
    mean = s_c / M
    var = jnp.maximum(sq_c / M - mean * mean, 0.0)     # biased variance (training-mode BN)
    scale = bn_gamma * lax.rsqrt(var + EPS)
    shift = bn_beta - mean * scale
    scale_l = jnp.tile(scale, pack).reshape(1, Cp).astype(jnp.float32)
    shift_l = jnp.tile(shift, pack).reshape(1, Cp).astype(jnp.float32)

    # ---- phase 2: elementwise pass over y (read bf16 y, write f32 out) ----
    out_packed = pl.pallas_call(
        _apply_kernel,
        grid=(grid_m,),
        in_specs=[
            pl.BlockSpec((tm, Cp), lambda i: (i, 0)),
            pl.BlockSpec((1, Cp), lambda i: (0, 0)),
            pl.BlockSpec((1, Cp), lambda i: (0, 0)),
        ],
        out_specs=pl.BlockSpec((tm, Cp), lambda i: (i, 0)),
        out_shape=jax.ShapeDtypeStruct((mp_pad, Cp), jnp.float32),
        compiler_params=pltpu.CompilerParams(
            dimension_semantics=("parallel",), vmem_limit_bytes=VMEM_LIMIT),
        cost_estimate=pl.CostEstimate(
            flops=3 * mp_pad * Cp, transcendentals=0,
            bytes_accessed=y_bytes + mp_pad * Cp * 4 + 2 * Cp * 4),
    )(y_packed, scale_l, shift_l)

    # un-pack lanes -> rows (same row-major layout), strip padding, back to NCHW
    out = out_packed.reshape(m_pad, Cout)[:M].reshape(N, Hout, Wout, Cout)
    return jnp.transpose(out, (0, 3, 1, 2))


def _reference(x_nchw, conv_w, conv_b, bn_gamma, bn_beta):
    """Pure-JAX reference (lax conv + training-mode BN + LeakyReLU)."""
    y = lax.conv_general_dilated(
        x_nchw, conv_w, window_strides=(2, 2), padding=((1, 1), (1, 1)),
        dimension_numbers=("NCHW", "OIHW", "NCHW"),
        precision=lax.Precision.HIGHEST)
    y = y + conv_b.reshape(1, -1, 1, 1)
    mean = jnp.mean(y, axis=(0, 2, 3), keepdims=True)
    var = jnp.mean((y - mean) ** 2, axis=(0, 2, 3), keepdims=True)
    y = (y - mean) * lax.rsqrt(var + EPS)
    y = y * bn_gamma.reshape(1, -1, 1, 1) + bn_beta.reshape(1, -1, 1, 1)
    return jnp.where(y >= 0, y, NEG_SLOPE * y)


if __name__ == "__main__":
    key = jax.random.PRNGKey(0)
    N, Cin, Cout, H, W = 2, 4, 8, 16, 16

    k_x, k_w, k_b, k_g, k_be = jax.random.split(key, 5)
    x = jax.random.normal(k_x, (N, Cin, H, W), dtype=jnp.float32)
    conv_w = 0.1 * jax.random.normal(k_w, (Cout, Cin, 3, 3), dtype=jnp.float32)
    conv_b = 0.1 * jax.random.normal(k_b, (Cout,), dtype=jnp.float32)
    bn_gamma = 1.0 + 0.1 * jax.random.normal(k_g, (Cout,), dtype=jnp.float32)
    bn_beta = 0.1 * jax.random.normal(k_be, (Cout,), dtype=jnp.float32)

    fwd = jax.jit(blocks_forward, static_argnames=("compute_dtype",))
    out = fwd(x, conv_w, conv_b, bn_gamma, bn_beta)   # bf16 matmul inputs, f32 epilogue
    out = jax.block_until_ready(out)

    ref = _reference(x, conv_w, conv_b, bn_gamma, bn_beta)
    assert out.shape == (N, Cout, H // 2, W // 2), out.shape
    max_err = float(jnp.max(jnp.abs(out - ref)))
    assert max_err < 6e-2, f"max abs err {max_err}"

    print("KERNEL_OK")
</pallas_src>

<mosaic_0001>
module attributes {stable_mosaic.version = 11 : i64} {
  func.func @_stats_kernel(%arg0: i32, %arg1: i32, %arg2: memref<8x1152xbf16, #tpu.memory_space<vmem>>, %arg3: memref<1152x256xbf16, #tpu.memory_space<vmem>>, %arg4: memref<8x256xbf16, #tpu.memory_space<vmem>>, %arg5: memref<1x1x256xf32, #tpu.memory_space<vmem>>, %arg6: memref<1x1x256xf32, #tpu.memory_space<vmem>>) attributes {dimension_semantics = [#tpu.dimension_semantics<parallel>, #tpu.dimension_semantics<arbitrary>], iteration_bounds = array<i64: 2, 1>, scalar_prefetch = 0 : i64, scratch_operands = 0 : i64, tpu.core_type = #tpu.core_type<tc>, window_params = [{transform_indices = @transform_0, window_bounds = array<i64: 8, 1152>}, {pipeline_mode = #tpu.pipeline_mode<synchronous>, transform_indices = @transform_1, window_bounds = array<i64: 1152, 256>}, {transform_indices = @transform_2, window_bounds = array<i64: 8, 256>}, {transform_indices = @transform_3, window_bounds = array<i64: 1, 1, 256>}, {transform_indices = @transform_4, window_bounds = array<i64: 1, 1, 256>}]} {
    %c0_i32 = arith.constant 0 : i32
    %0 = arith.cmpi eq, %arg1, %c0_i32 : i32
    %1 = arith.extui %0 : i1 to i32
    %c0_i32_0 = arith.constant 0 : i32
    %2 = arith.cmpi ne, %1, %c0_i32_0 : i32
    scf.if %2 {
      %cst_20 = arith.constant 0.000000e+00 : f32
      %21 = vector.broadcast %cst_20 : f32 to vector<1x1x256xf32>
      %c0_21 = arith.constant 0 : index
      %c0_22 = arith.constant 0 : index
      %c0_23 = arith.constant 0 : index
      %22 = vector.load %arg5[%c0_21, %c0_22, %c0_23] : memref<1x1x256xf32, #tpu.memory_space<vmem>>, vector<1x1x256xf32>
      tpu.vector_store %arg5[%c0_21, %c0_22, %c0_23], %21 {strides = array<i32>} : memref<1x1x256xf32, #tpu.memory_space<vmem>>, vector<1x1x256xf32>,
      %cst_24 = arith.constant 0.000000e+00 : f32
      %23 = vector.broadcast %cst_24 : f32 to vector<1x1x256xf32>
      %c0_25 = arith.constant 0 : index
      %c0_26 = arith.constant 0 : index
      %c0_27 = arith.constant 0 : index
      %24 = vector.load %arg6[%c0_25, %c0_26, %c0_27] : memref<1x1x256xf32, #tpu.memory_space<vmem>>, vector<1x1x256xf32>
      tpu.vector_store %arg6[%c0_25, %c0_26, %c0_27], %23 {strides = array<i32>} : memref<1x1x256xf32, #tpu.memory_space<vmem>>, vector<1x1x256xf32>,
    } else {
    }
    %c0 = arith.constant 0 : index
    %c0_1 = arith.constant 0 : index
    %3 = vector.load %arg2[%c0, %c0_1] : memref<8x1152xbf16, #tpu.memory_space<vmem>>, vector<8x1152xbf16>
    %c0_2 = arith.constant 0 : index
    %c0_3 = arith.constant 0 : index
    %4 = vector.load %arg3[%c0_2, %c0_3] : memref<1152x256xbf16, #tpu.memory_space<vmem>>, vector<1152x256xbf16>
    %cst = arith.constant dense<0.000000e+00> : vector<8x256xf32>
    %5 = tpu.matmul %3, %4, %cst {dimension_numbers = #tpu.dot_dimension_numbers<[1], [0], [0], [1], [0, 0, 1, 1], [], []>} : vector<8x1152xbf16>, vector<1152x256xbf16>, vector<8x256xf32> -> vector<8x256xf32>
    %6 = arith.truncf %5 : vector<8x256xf32> to vector<8x256xbf16>
    %c0_4 = arith.constant 0 : index
    %c0_5 = arith.constant 0 : index
    %7 = vector.load %arg4[%c0_4, %c0_5] : memref<8x256xbf16, #tpu.memory_space<vmem>>, vector<8x256xbf16>
    tpu.vector_store %arg4[%c0_4, %c0_5], %6 {strides = array<i32>} : memref<8x256xbf16, #tpu.memory_space<vmem>>, vector<8x256xbf16>,
    %c0_6 = arith.constant 0 : index
    %c0_7 = arith.constant 0 : index
    %c0_8 = arith.constant 0 : index
    %8 = vector.load %arg5[%c0_6, %c0_7, %c0_8] : memref<1x1x256xf32, #tpu.memory_space<vmem>>, vector<1x1x256xf32>
    %cst_9 = arith.constant dense<0.000000e+00> : vector<256xf32>
    %9 = vector.multi_reduction <add>, %5, %cst_9 [0] : vector<8x256xf32> to vector<256xf32>
    %10 = vector.shape_cast %9 : vector<256xf32> to vector<1x256xf32>
    %11 = vector.shape_cast %10 : vector<1x256xf32> to vector<1x1x256xf32>
    %12 = arith.addf %8, %11 : vector<1x1x256xf32>
    %c0_10 = arith.constant 0 : index
    %c0_11 = arith.constant 0 : index
    %c0_12 = arith.constant 0 : index
    %13 = vector.load %arg5[%c0_10, %c0_11, %c0_12] : memref<1x1x256xf32, #tpu.memory_space<vmem>>, vector<1x1x256xf32>
    tpu.vector_store %arg5[%c0_10, %c0_11, %c0_12], %12 {strides = array<i32>} : memref<1x1x256xf32, #tpu.memory_space<vmem>>, vector<1x1x256xf32>,
    %c0_13 = arith.constant 0 : index
    %c0_14 = arith.constant 0 : index
    %c0_15 = arith.constant 0 : index
    %14 = vector.load %arg6[%c0_13, %c0_14, %c0_15] : memref<1x1x256xf32, #tpu.memory_space<vmem>>, vector<1x1x256xf32>
    %15 = arith.mulf %5, %5 : vector<8x256xf32>
    %cst_16 = arith.constant dense<0.000000e+00> : vector<256xf32>
    %16 = vector.multi_reduction <add>, %15, %cst_16 [0] : vector<8x256xf32> to vector<256xf32>
    %17 = vector.shape_cast %16 : vector<256xf32> to vector<1x256xf32>
    %18 = vector.shape_cast %17 : vector<1x256xf32> to vector<1x1x256xf32>
    %19 = arith.addf %14, %18 : vector<1x1x256xf32>
    %c0_17 = arith.constant 0 : index
    %c0_18 = arith.constant 0 : index
    %c0_19 = arith.constant 0 : index
    %20 = vector.load %arg6[%c0_17, %c0_18, %c0_19] : memref<1x1x256xf32, #tpu.memory_space<vmem>>, vector<1x1x256xf32>
    tpu.vector_store %arg6[%c0_17, %c0_18, %c0_19], %19 {strides = array<i32>} : memref<1x1x256xf32, #tpu.memory_space<vmem>>, vector<1x1x256xf32>,
    return
  }
  func.func @transform_0(%arg0: i32, %arg1: i32) -> (i32, i32) {
    %c1_i32 = arith.constant 1 : i32
    %0 = arith.muli %arg0, %c1_i32 : i32
    %1 = arith.addi %0, %arg1 : i32
    %c0_i32 = arith.constant 0 : i32
    %c0_i32_0 = arith.constant 0 : i32
    return %1, %c0_i32 : i32, i32
  }
  func.func @transform_1(%arg0: i32, %arg1: i32) -> (i32, i32) {
    %c0_i32 = arith.constant 0 : i32
    %c0_i32_0 = arith.constant 0 : i32
    %c0_i32_1 = arith.constant 0 : i32
    return %c0_i32, %c0_i32_0 : i32, i32
  }
  func.func @transform_2(%arg0: i32, %arg1: i32) -> (i32, i32) {
    %c1_i32 = arith.constant 1 : i32
    %0 = arith.muli %arg0, %c1_i32 : i32
    %1 = arith.addi %0, %arg1 : i32
    %c0_i32 = arith.constant 0 : i32
    %c0_i32_0 = arith.constant 0 : i32
    return %1, %c0_i32 : i32, i32
  }
  func.func @transform_3(%arg0: i32, %arg1: i32) -> (i32, i32, i32) {
    %c0_i32 = arith.constant 0 : i32
    %c0_i32_0 = arith.constant 0 : i32
    %c0_i32_1 = arith.constant 0 : i32
    return %arg0, %c0_i32, %c0_i32_0 : i32, i32, i32
  }
  func.func @transform_4(%arg0: i32, %arg1: i32) -> (i32, i32, i32) {
    %c0_i32 = arith.constant 0 : i32
    %c0_i32_0 = arith.constant 0 : i32
    %c0_i32_1 = arith.constant 0 : i32
    return %arg0, %c0_i32, %c0_i32_0 : i32, i32, i32
  }
}

module attributes {stable_mosaic.version = 11 : i64} {
  func.func @_apply_kernel(%arg0: i32, %arg1: memref<8x256xbf16, #tpu.memory_space<vmem>>, %arg2: memref<1x256xf32, #tpu.memory_space<vmem>>, %arg3: memref<1x256xf32, #tpu.memory_space<vmem>>, %arg4: memref<8x256xf32, #tpu.memory_space<vmem>>) attributes {dimension_semantics = [#tpu.dimension_semantics<parallel>], iteration_bounds = array<i64: 2>, scalar_prefetch = 0 : i64, scratch_operands = 0 : i64, tpu.core_type = #tpu.core_type<tc>, window_params = [{transform_indices = @transform_0, window_bounds = array<i64: 8, 256>}, {pipeline_mode = #tpu.pipeline_mode<synchronous>, transform_indices = @transform_1, window_bounds = array<i64: 1, 256>}, {pipeline_mode = #tpu.pipeline_mode<synchronous>, transform_indices = @transform_2, window_bounds = array<i64: 1, 256>}, {transform_indices = @transform_3, window_bounds = array<i64: 8, 256>}]} {
    %c0 = arith.constant 0 : index
    %c0_0 = arith.constant 0 : index
    %0 = vector.load %arg1[%c0, %c0_0] : memref<8x256xbf16, #tpu.memory_space<vmem>>, vector<8x256xbf16>
    %1 = arith.extf %0 : vector<8x256xbf16> to vector<8x256xf32>
    %c0_1 = arith.constant 0 : index
    %c0_2 = arith.constant 0 : index
    %2 = vector.load %arg2[%c0_1, %c0_2] : memref<1x256xf32, #tpu.memory_space<vmem>>, vector<1x256xf32>
    %3 = vector.broadcast %2 : vector<1x256xf32> to vector<8x256xf32>
    %4 = arith.mulf %1, %3 : vector<8x256xf32>
    %c0_3 = arith.constant 0 : index
    %c0_4 = arith.constant 0 : index
    %5 = vector.load %arg3[%c0_3, %c0_4] : memref<1x256xf32, #tpu.memory_space<vmem>>, vector<1x256xf32>
    %6 = vector.broadcast %5 : vector<1x256xf32> to vector<8x256xf32>
    %7 = arith.addf %4, %6 : vector<8x256xf32>
    %cst = arith.constant 0.000000e+00 : f32
    %8 = vector.broadcast %cst : f32 to vector<8x256xf32>
    %9 = arith.cmpf oge, %7, %8 : vector<8x256xf32>
    %cst_5 = arith.constant 2.000000e-01 : f32
    %10 = vector.broadcast %cst_5 : f32 to vector<8x256xf32>
    %11 = arith.mulf %10, %7 : vector<8x256xf32>
    %12 = arith.select %9, %7, %11 : vector<8x256xi1>, vector<8x256xf32>
    %c0_6 = arith.constant 0 : index
    %c0_7 = arith.constant 0 : index
    %13 = vector.load %arg4[%c0_6, %c0_7] : memref<8x256xf32, #tpu.memory_space<vmem>>, vector<8x256xf32>
    tpu.vector_store %arg4[%c0_6, %c0_7], %12 {strides = array<i32>} : memref<8x256xf32, #tpu.memory_space<vmem>>, vector<8x256xf32>,
    return
  }
  func.func @transform_0(%arg0: i32) -> (i32, i32) {
    %c0_i32 = arith.constant 0 : i32
    %c0_i32_0 = arith.constant 0 : i32
    return %arg0, %c0_i32 : i32, i32
  }
  func.func @transform_1(%arg0: i32) -> (i32, i32) {
    %c0_i32 = arith.constant 0 : i32
    %c0_i32_0 = arith.constant 0 : i32
    %c0_i32_1 = arith.constant 0 : i32
    return %c0_i32, %c0_i32_0 : i32, i32
  }
  func.func @transform_2(%arg0: i32) -> (i32, i32) {
    %c0_i32 = arith.constant 0 : i32
    %c0_i32_0 = arith.constant 0 : i32
    %c0_i32_1 = arith.constant 0 : i32
    return %c0_i32, %c0_i32_0 : i32, i32
  }
  func.func @transform_3(%arg0: i32) -> (i32, i32) {
    %c0_i32 = arith.constant 0 : i32
    %c0_i32_0 = arith.constant 0 : i32
    return %arg0, %c0_i32 : i32, i32
  }
}

</mosaic_0001>

<llo_original>
// kernel: mul.4
$region0: #{mul.4}
  %s0 = inlined_call_operand.hbm [shape: f32[3,3,4,8], index: 0, kind: input, shape index: {}]
  %s1 = inlined_call_operand.vmem [shape: f32[36,8], index: 1, kind: output, shape index: {}]
  $region1: #{mul.4} parent=0
    #allocation0 [shape = 'u8[18432]{0}', space=vmem, size = 0x4800, scoped, tag = 'operand span for operand 0']
    #allocation1 [shape = 's32[1]{0}', space=sflag, size = 0x4, scoped, tag = 'scoped memory for mul.4']
    #allocation2 [shape = 'u8[36864]{0}', space=vmem, size = 0x9000, scoped, tag = 'scoped mem for input reshape']
    %2 = vsyncpa [#allocation1], 0
    %s4 = ssub.s32 576, 576
    %5 = vsyncadd [#allocation1], %s4
    %s7 = sshll.u32 [#allocation0], 4
    %s8 = int_to_ptr.vmem [resolvable:$true] %s7
    %10 = dma.hbm_to_vmem [thread:$0]  %s0, 576, %s8, [#allocation1]
    %11 = dma.done [#allocation1], 576
    %s13 = sshllo.u32 0, 4
    %s14 = smul.addr 4, 8
    %s15 = scalar_lea.vmem [#allocation0], %s14
    %v16 = vld [vmem:[%s15] sm:%s13]
    %s17 = scalar_lea.vmem [#allocation2], 64
    %18 = vst [vmem:[%s17] sm:%s13] %v16
    %s19 = smul.addr 4, 7
    %s20 = scalar_lea.vmem [#allocation0], %s19
    %v21 = vld [vmem:[%s20] sm:%s13]
    %s22 = scalar_lea.vmem [#allocation2], 56
    %23 = vst [vmem:[%s22] sm:%s13] %v21
    %s24 = smul.addr 4, 6
    %s25 = scalar_lea.vmem [#allocation0], %s24
    %v26 = vld [vmem:[%s25] sm:%s13]
    %s27 = scalar_lea.vmem [#allocation2], 48
    %28 = vst [vmem:[%s27] sm:%s13] %v26
    %s29 = smul.addr 4, 5
    %s30 = scalar_lea.vmem [#allocation0], %s29
    %v31 = vld [vmem:[%s30] sm:%s13]
    %s32 = scalar_lea.vmem [#allocation2], 40
    %33 = vst [vmem:[%s32] sm:%s13] %v31
    %s34 = smul.addr 4, 4
    %s35 = scalar_lea.vmem [#allocation0], %s34
    %v36 = vld [vmem:[%s35] sm:%s13]
    %s37 = scalar_lea.vmem [#allocation2], 32
    %38 = vst [vmem:[%s37] sm:%s13] %v36
    %s39 = smul.addr 4, 3
    %s40 = scalar_lea.vmem [#allocation0], %s39
    %v41 = vld [vmem:[%s40] sm:%s13]
    %s42 = scalar_lea.vmem [#allocation2], 24
    %43 = vst [vmem:[%s42] sm:%s13] %v41
    %s44 = smul.addr 4, 2
    %s45 = scalar_lea.vmem [#allocation0], %s44
    %v46 = vld [vmem:[%s45] sm:%s13]
    %s47 = scalar_lea.vmem [#allocation2], 16
    %48 = vst [vmem:[%s47] sm:%s13] %v46
    %s49 = scalar_lea.vmem [#allocation0], 4
    %v50 = vld [vmem:[%s49] sm:%s13]
    %s51 = scalar_lea.vmem [#allocation2], 8
    %52 = vst [vmem:[%s51] sm:%s13] %v50
    %v53 = vld [vmem:[#allocation0] sm:%s13]
    %54 = vst [vmem:[#allocation2] sm:%s13] %v53
    %v55 = vld [vmem:[#allocation2] sm:$0xf]
    %vm56 = vcmask 64512
    %57 = vst.msk [vmem:[%s1] sm:$0xf] %vm56, %v55
    %s58 = scalar_lea.vmem [#allocation2], 8
    %v59 = vld [vmem:[%s58] sm:$0xf]
    %vm60 = vcmask 64512
    %s61 = scalar_lea.vmem %s1, 4
    %62 = vst.msk [vmem:[%s61] sm:$0xf] %vm60, %v59
    %s63 = scalar_lea.vmem [#allocation2], 16
    %v64 = vld [vmem:[%s63] sm:$0xf]
    %vm65 = vcmask 64512
    %s66 = scalar_lea.vmem %s1, 8
    %67 = vst.msk [vmem:[%s66] sm:$0xf] %vm65, %v64
    %s68 = scalar_lea.vmem [#allocation2], 24
    %v69 = vld [vmem:[%s68] sm:$0xf]
    %vm70 = vcmask 64512
    %s71 = scalar_lea.vmem %s1, 12
    %72 = vst.msk [vmem:[%s71] sm:$0xf] %vm70, %v69
    %s73 = scalar_lea.vmem [#allocation2], 32
    %v74 = vld [vmem:[%s73] sm:$0xf]
    %vm75 = vcmask 64512
    %s76 = scalar_lea.vmem %s1, 16
    %77 = vst.msk [vmem:[%s76] sm:$0xf] %vm75, %v74
    %s78 = scalar_lea.vmem [#allocation2], 40
    %v79 = vld [vmem:[%s78] sm:$0xf]
    %vm80 = vcmask 64512
    %s81 = scalar_lea.vmem %s1, 20
    %82 = vst.msk [vmem:[%s81] sm:$0xf] %vm80, %v79
    %s83 = scalar_lea.vmem [#allocation2], 48
    %v84 = vld [vmem:[%s83] sm:$0xf]
    %vm85 = vcmask 64512
    %s86 = scalar_lea.vmem %s1, 24
    %87 = vst.msk [vmem:[%s86] sm:$0xf] %vm85, %v84
    %s88 = scalar_lea.vmem [#allocation2], 56
    %v89 = vld [vmem:[%s88] sm:$0xf]
    %vm90 = vcmask 64512
    %s91 = scalar_lea.vmem %s1, 28
    %92 = vst.msk [vmem:[%s91] sm:$0xf] %vm90, %v89
    %s93 = scalar_lea.vmem [#allocation2], 64
    %v94 = vld [vmem:[%s93] sm:$0xf]
    %vm95 = vcmask 64512
    %s96 = scalar_lea.vmem %s1, 32
    %97 = vst.msk [vmem:[%s96] sm:$0xf] %vm95, %v94
    %98 = vsyncpa [#allocation1], 1

// kernel: tile.18
$region0: #{tile.18}
  #allocation0 [shape = 's32[1]{0}', space=sflag, size = 0x4, scoped, tag = 'scoped memory for tile.18']
  %s0 = inlined_call_operand.vmem [shape: f32[8], index: 0, kind: input, shape index: {}]
  %s1 = inlined_call_operand.vmem [shape: f32[32,8], index: 1, kind: output, shape index: {}]
  // Predicated region
  $region2: #{tile.18} parent=0 // pred_check
    _
  $region3: #{tile.18} parent=0 // pred_check_branch
    %3 = sbr.rel (0) target = $region5
  $region4: #{tile.18} parent=0 // pred_region
    _
  $region5: #{tile.18} parent=0 // pred_fallthru
    _
  %v4 = vld [vmem:[%s0] ss:$0 sm:$0xff]
  %5 = vst [vmem:[%s1] sm:$0xff] %v4
  %s6 = scalar_lea.vmem %s1, 8
  %7 = vst [vmem:[%s6] sm:$0xff] %v4
  %s8 = scalar_lea.vmem %s1, 16
  %9 = vst [vmem:[%s8] sm:$0xff] %v4
  %s10 = scalar_lea.vmem %s1, 24
  %11 = vst [vmem:[%s10] sm:$0xff] %v4

// kernel: tile.19
$region0: #{tile.19}
  %s0 = inlined_call_operand.vmem [shape: f32[32,8], index: 0, kind: input, shape index: {}]
  %s1 = inlined_call_operand.vmem [shape: f32[1,256], index: 1, kind: output, shape index: {}]
  $region1: #{tile.19} parent=0
    #allocation0 [shape = 'u8[8192]{0}', space=vmem, size = 0x2000, scoped, tag = 'scoped mem for output reshape']
    %s2 = smov 3
    %v3 = vld [vmem:[%s0] ss:$16 sm:%s2]
    %vm4 = vcmask 64512
    %5 = vst.msk [vmem:[#allocation0] ss:$8 sm:$0x3] %vm4, %v3
    %s6 = scalar_lea.vmem %s0, 15
    %s7 = smov 3
    %v8 = vld [vmem:[%s6] ss:$16 sm:%s7]
    %9 = vrot.lane.b32.xlu0 %v8, 120
    %v10 = vpop.permute.xlu0 %9
    %vm11 = vcmask 1048512
    %12 = vst.msk [vmem:[#allocation0] ss:$8 sm:$0x3] %vm11, %v10
    %s13 = scalar_lea.vmem %s0, 14
    %s14 = smov 3
    %v15 = vld [vmem:[%s13] ss:$16 sm:%s14]
    %16 = vrot.lane.b32.xlu0 %v15, 112
    %v17 = vpop.permute.xlu0 %16
    %vm18 = vcmask 982912
    %19 = vst.msk [vmem:[#allocation0] ss:$8 sm:$0x3] %vm18, %v17
    %s20 = scalar_lea.vmem %s0, 13
    %s21 = smov 3
    %v22 = vld [vmem:[%s20] ss:$16 sm:%s21]
    %23 = vrot.lane.b32.xlu0 %v22, 104
    %v24 = vpop.permute.xlu0 %23
    %vm25 = vcmask 917312
    %26 = vst.msk [vmem:[#allocation0] ss:$8 sm:$0x3] %vm25, %v24
    %s27 = scalar_lea.vmem %s0, 12
    %s28 = smov 3
    %v29 = vld [vmem:[%s27] ss:$16 sm:%s28]
    %30 = vrot.lane.b32.xlu0 %v29, 96
    %v31 = vpop.permute.xlu0 %30
    %vm32 = vcmask 851712
    %33 = vst.msk [vmem:[#allocation0] ss:$8 sm:$0x3] %vm32, %v31
    %s34 = scalar_lea.vmem %s0, 11
    %s35 = smov 3
    %v36 = vld [vmem:[%s34] ss:$16 sm:%s35]
    %37 = vrot.lane.b32.xlu0 %v36, 88
    %v38 = vpop.permute.xlu0 %37
    %vm39 = vcmask 786112
    %40 = vst.msk [vmem:[#allocation0] ss:$8 sm:$0x3] %vm39, %v38
    %s41 = scalar_lea.vmem %s0, 10
    %s42 = smov 3
    %v43 = vld [vmem:[%s41] ss:$16 sm:%s42]
    %44 = vrot.lane.b32.xlu0 %v43, 80
    %v45 = vpop.permute.xlu0 %44
    %vm46 = vcmask 720512
    %47 = vst.msk [vmem:[#allocation0] ss:$8 sm:$0x3] %vm46, %v45
    %s48 = scalar_lea.vmem %s0, 9
    %s49 = smov 3
    %v50 = vld [vmem:[%s48] ss:$16 sm:%s49]
    %51 = vrot.lane.b32.xlu0 %v50, 72
    %v52 = vpop.permute.xlu0 %51
    %vm53 = vcmask 654912
    %54 = vst.msk [vmem:[#allocation0] ss:$8 sm:$0x3] %vm53, %v52
    %s55 = scalar_lea.vmem %s0, 8
    %s56 = smov 3
    %v57 = vld [vmem:[%s55] ss:$16 sm:%s56]
    %58 = vrot.lane.b32.xlu0 %v57, 64
    %v59 = vpop.permute.xlu0 %58
    %vm60 = vcmask 589312
    %61 = vst.msk [vmem:[#allocation0] ss:$8 sm:$0x3] %vm60, %v59
    %s62 = scalar_lea.vmem %s0, 7
    %s63 = smov 3
    %v64 = vld [vmem:[%s62] ss:$16 sm:%s63]
    %65 = vrot.lane.b32.xlu0 %v64, 56
    %v66 = vpop.permute.xlu0 %65
    %vm67 = vcmask 523712
    %68 = vst.msk [vmem:[#allocation0] ss:$8 sm:$0x3] %vm67, %v66
    %s69 = scalar_lea.vmem %s0, 6
    %s70 = smov 3
    %v71 = vld [vmem:[%s69] ss:$16 sm:%s70]
    %72 = vrot.lane.b32.xlu0 %v71, 48
    %v73 = vpop.permute.xlu0 %72
    %vm74 = vcmask 458112
    %75 = vst.msk [vmem:[#allocation0] ss:$8 sm:$0x3] %vm74, %v73
    %s76 = scalar_lea.vmem %s0, 5
    %s77 = smov 3
    %v78 = vld [vmem:[%s76] ss:$16 sm:%s77]
    %79 = vrot.lane.b32.xlu0 %v78, 40
    %v80 = vpop.permute.xlu0 %79
    %vm81 = vcmask 392512
    %82 = vst.msk [vmem:[#allocation0] ss:$8 sm:$0x3] %vm81, %v80
    %s83 = scalar_lea.vmem %s0, 4
    %s84 = smov 3
    %v85 = vld [vmem:[%s83] ss:$16 sm:%s84]
    %86 = vrot.lane.b32.xlu0 %v85, 32
    %v87 = vpop.permute.xlu0 %86
    %vm88 = vcmask 326912
    %89 = vst.msk [vmem:[#allocation0] ss:$8 sm:$0x3] %vm88, %v87
    %s90 = scalar_lea.vmem %s0, 3
    %s91 = smov 3
    %v92 = vld [vmem:[%s90] ss:$16 sm:%s91]
    %93 = vrot.lane.b32.xlu0 %v92, 24
    %v94 = vpop.permute.xlu0 %93
    %vm95 = vcmask 261312
    %96 = vst.msk [vmem:[#allocation0] ss:$8 sm:$0x3] %vm95, %v94
    %s97 = scalar_lea.vmem %s0, 2
    %s98 = smov 3
    %v99 = vld [vmem:[%s97] ss:$16 sm:%s98]
    %100 = vrot.lane.b32.xlu0 %v99, 16
    %v101 = vpop.permute.xlu0 %100
    %vm102 = vcmask 195712
    %103 = vst.msk [vmem:[#allocation0] ss:$8 sm:$0x3] %vm102, %v101
    %s104 = scalar_lea.vmem %s0, 1
    %s105 = smov 3
    %v106 = vld [vmem:[%s104] ss:$16 sm:%s105]
    %107 = vrot.lane.b32.xlu0 %v106, 8
    %v108 = vpop.permute.xlu0 %107
    %vm109 = vcmask 130112
    %110 = vst.msk [vmem:[#allocation0] ss:$8 sm:$0x3] %vm109, %v108
    %s112 = sshllo.u32 0, 1
    %v114 = vld [vmem:[#allocation0] sm:%s112]
    %s115 = sshllo.u32 0, 1
    %116 = vst [vmem:[%s1] sm:%s115] %v114
    %s117 = scalar_lea.vmem [#allocation0], 8
    %v118 = vld [vmem:[%s117] sm:%s112]
    %s119 = sshllo.u32 0, 1
    %s120 = scalar_lea.vmem %s1, 1
    %121 = vst [vmem:[%s120] sm:%s119] %v118

// kernel: blocks_forward.3
$region0: #{blocks_forward.3}
  #allocation0 [shape = 'u32[]', space=smem, size = 0x4, offset = 0x4, fixed_abs, tag = 'smem constant byte address 0x4 - core index']
  #allocation1 [shape = 'u32[144,128]{1,0:T(1,128)}', space=vmem, size = 0x12000, scoped, tag = 'internal scratch']
  %s0 = inlined_call_operand.vmem [shape: bf16[16,256], index: 0, kind: input, shape index: {}]
  %s1 = inlined_call_operand.vmem [shape: f32[1,256], index: 1, kind: input, shape index: {}]
  %s2 = inlined_call_operand.vmem [shape: f32[1,256], index: 2, kind: input, shape index: {}]
  %s3 = inlined_call_operand.vmem [shape: f32[16,256], index: 3, kind: output, shape index: {}]
  %s4 = sld [smem:[#allocation0]]
  $region45: #{blocks_forward.3} parent=0
    _
  %s6 = ssub.s32 1, %s4
  %s7 = scalar_select 0, %s6, %s4
  loop: start=0, step=1, limit=4
  $region2: #{blocks_forward.3} parent=0 // loop_pre_header
    _
  $region3: #{blocks_forward.3} parent=0 // loop_header
    %s9 = sphi 0, %s13
    %p10 = scmp.ge.s32.totalorder %s9, 4
    %s19 = sphi 0, %s21
    %s22 = sphi 0, %s19
    %s23 = sphi 0, %s22
    %s39 = sphi 0, %s23
    %s43 = sphi 0, %s43
    %s45 = sphi 0, %s43
    %s46 = sphi 0, %s45
    %s60 = sphi 0, %s46
    %s64 = sphi 0, %s64
    %s66 = sphi 0, %s64
    %s67 = sphi 0, %s66
    %s81 = sphi 0, %s67
    %s87 = sphi 0, %s89
    %s90 = sphi 0, %s87
    %s91 = sphi 0, %s90
    %s107 = sphi 0, %s91
  $region4: #{blocks_forward.3} parent=0 // loop_header_branch
    %12 = sbr.rel (%p10) target = $region8
  $region5: #{blocks_forward.3} parent=0 // loop_body
    %s14 = ssub.s32 %s9, 1
    %s15 = ssub.s32 %s9, 2
    %s16 = sadd.s32 %s9, 1
    %s17 = ssub.s32 %s9, %s16
    %p18 = scmp.eq.s32.totalorder %s17, 0
    %s20 = sadd.s32 %s19, 1
    %s21 = scalar_select %p18, %s19, %s20
    %p24 = pneg %p18
    %p25 = scmp.eq.s32.totalorder %s9, 1
    %p26 = por %p24, %p25
    %p27 = scmp.ne.s32.totalorder %s19, %s22
    %p28 = scmp.eq.s32.totalorder %s9, 0
    %p29 = por %p27, %p28
    %p30 = scmp.ne.s32.totalorder %s19, %s22
    %p31 = scmp.eq.s32.totalorder %s14, 1
    %p32 = por %p30, %p31
    %p33 = scmp.ne.s32.totalorder %s22, %s23
    %p34 = scmp.eq.s32.totalorder %s14, 0
    %p35 = por %p33, %p34
    %p36 = scmp.ne.s32.totalorder %s22, %s23
    %p37 = scmp.eq.s32.totalorder %s15, 1
    %p38 = por %p36, %p37
    %p40 = scmp.ne.s32.totalorder %s23, %s39
    %p41 = scmp.eq.s32.totalorder %s15, 0
    %p42 = por %p40, %p41
    %s44 = sadd.s32 %s43, 1
    %p47 = scmp.eq.s32.totalorder %s9, 1
    %p48 = scmp.ne.s32.totalorder %s43, %s45
    %p49 = scmp.eq.s32.totalorder %s9, 0
    %p50 = por %p48, %p49
    %p51 = scmp.ne.s32.totalorder %s43, %s45
    %p52 = scmp.eq.s32.totalorder %s14, 1
    %p53 = por %p51, %p52
    %p54 = scmp.ne.s32.totalorder %s45, %s46
    %p55 = scmp.eq.s32.totalorder %s14, 0
    %p56 = por %p54, %p55
    %p57 = scmp.ne.s32.totalorder %s45, %s46
    %p58 = scmp.eq.s32.totalorder %s15, 1
    %p59 = por %p57, %p58
    %p61 = scmp.ne.s32.totalorder %s46, %s60
    %p62 = scmp.eq.s32.totalorder %s15, 0
    %p63 = por %p61, %p62
    %s65 = sadd.s32 %s64, 1
    %p68 = scmp.eq.s32.totalorder %s9, 1
    %p69 = scmp.ne.s32.totalorder %s64, %s66
    %p70 = scmp.eq.s32.totalorder %s9, 0
    %p71 = por %p69, %p70
    %p72 = scmp.ne.s32.totalorder %s64, %s66
    %p73 = scmp.eq.s32.totalorder %s14, 1
    %p74 = por %p72, %p73
    %p75 = scmp.ne.s32.totalorder %s66, %s67
    %p76 = scmp.eq.s32.totalorder %s14, 0
    %p77 = por %p75, %p76
    %p78 = scmp.ne.s32.totalorder %s66, %s67
    %p79 = scmp.eq.s32.totalorder %s15, 1
    %p80 = por %p78, %p79
    %p82 = scmp.ne.s32.totalorder %s67, %s81
    %p83 = scmp.eq.s32.totalorder %s15, 0
    %p84 = por %p82, %p83
    %s85 = ssub.s32 %s9, %s16
    %p86 = scmp.eq.s32.totalorder %s85, 0
    %s88 = sadd.s32 %s87, 1
    %s89 = scalar_select %p86, %s87, %s88
    %p92 = pneg %p86
    %p93 = scmp.eq.s32.totalorder %s9, 1
    %p94 = por %p92, %p93
    %p95 = scmp.ne.s32.totalorder %s87, %s90
    %p96 = scmp.eq.s32.totalorder %s9, 0
    %p97 = por %p95, %p96
    %p98 = scmp.ne.s32.totalorder %s87, %s90
    %p99 = scmp.eq.s32.totalorder %s14, 1
    %p100 = por %p98, %p99
    %p101 = scmp.ne.s32.totalorder %s90, %s91
    %p102 = scmp.eq.s32.totalorder %s14, 0
    %p103 = por %p101, %p102
    %p104 = scmp.ne.s32.totalorder %s90, %s91
    %p105 = scmp.eq.s32.totalorder %s15, 1
    %p106 = por %p104, %p105
    %p108 = scmp.ne.s32.totalorder %s91, %s107
    %p109 = scmp.eq.s32.totalorder %s15, 0
    %p110 = por %p108, %p109
    %p111 = scmp.le.s32.totalorder 1, %s9
    %p112 = scmp.lt.s32.totalorder %s9, 3
    %p113 = pnand %p111, %p112
    %p114 = pneg %p113
    // Predicated region
    $region9: #{blocks_forward.3} parent=5 // pred_check
      _
    $region10: #{blocks_forward.3} parent=5 // pred_check_branch
      %116 = sbr.rel (%p113) target = $region12
    $region11: #{blocks_forward.3} parent=5 // pred_region
      %s117 = ssub.s32 %s9, 1
      // Predicated region
      $region13: #{blocks_forward.3} parent=11 // pred_check
        %p118 = pneg %p56
      $region14: #{blocks_forward.3} parent=11 // pred_check_branch
        %120 = sbr.rel (%p118) target = $region16
      $region15: #{blocks_forward.3} parent=11 // pred_region
        _
      $region16: #{blocks_forward.3} parent=11 // pred_fallthru
        _
      // Predicated region
      $region17: #{blocks_forward.3} parent=11 // pred_check
        %p121 = pneg %p77
      $region18: #{blocks_forward.3} parent=11 // pred_check_branch
        %123 = sbr.rel (%p121) target = $region20
      $region19: #{blocks_forward.3} parent=11 // pred_region
        _
      $region20: #{blocks_forward.3} parent=11 // pred_fallthru
        _
    $region12: #{blocks_forward.3} parent=5 // pred_fallthru
      _
    %p124 = scmp.lt.s32.totalorder %s9, 2
    // Predicated region
    $region21: #{blocks_forward.3} parent=5 // pred_check
      %p125 = pneg %p124
    $region22: #{blocks_forward.3} parent=5 // pred_check_branch
      %127 = sbr.rel (%p125) target = $region24
    $region23: #{blocks_forward.3} parent=5 // pred_region
      // Predicated region
      $region25: #{blocks_forward.3} parent=23 // pred_check
        %p128 = pneg %p29
      $region26: #{blocks_forward.3} parent=23 // pred_check_branch
        %130 = sbr.rel (%p128) target = $region28
      $region27: #{blocks_forward.3} parent=23 // pred_region
        %p131 = scmp.lt.s32.totalorder %s9, 1
        %s132 = scalar_select %p131, %s9, 1
        %s133 = smul.addr %s132, 2
        %s134 = smul.addr %s133, 4
        %s135 = scalar_lea.vmem %s0, %s134
      $region28: #{blocks_forward.3} parent=23 // pred_fallthru
        _
    $region24: #{blocks_forward.3} parent=5 // pred_fallthru
      _
    %p136 = scmp.le.s32.totalorder 1, %s9
    %p137 = scmp.lt.s32.totalorder %s9, 3
    %p138 = pnand %p136, %p137
    %p139 = pneg %p138
    // Predicated region
    $region29: #{blocks_forward.3} parent=5 // pred_check
      _
    $region30: #{blocks_forward.3} parent=5 // pred_check_branch
      %141 = sbr.rel (%p138) target = $region32
    $region31: #{blocks_forward.3} parent=5 // pred_region
      %s142 = ssub.s32 %s9, 1
      %p143 = scmp.lt.s32.totalorder %s14, 1
      %s144 = scalar_select %p143, %s14, 1
      %s145 = smul.addr %s144, 2
      %s146 = smul.addr %s145, 4
      %s147 = scalar_lea.vmem %s0, %s146
      %p148 = pneg %p35
      %p149 = pneg %p32
      %p150 = pneg %p56
      %p151 = pneg %p53
      %p152 = pneg %p77
      %p153 = pneg %p74
      %p154 = pneg %p103
      %p155 = pneg %p100
      %p156 = scmp.lt.s32.totalorder %s14, 1
      %s157 = scalar_select %p156, %s14, 1
      %s158 = smul.addr %s157, 2
      %s159 = smul.addr %s158, 8
      %s160 = scalar_lea.vmem %s3, %s159
      %p161 = scmp.lt.s32.totalorder %s14, 1
      %s162 = scalar_select %p161, %s14, 1
      %s163 = smul.addr %s162, 2
      %s164 = smul.addr %s163, 4
      %s165 = scalar_lea.vmem %s0, %s164
      %p166 = scmp.lt.s32.totalorder %s14, 1
      %s167 = scalar_select %p166, %s14, 1
      %s168 = smul.addr %s167, 2
      %s169 = smul.addr %s168, 8
      %s170 = scalar_lea.vmem %s3, %s169
      %v171 = vld [vmem:[%s165] sm:$0xff]
      %v172 = vunpack.c.l.bf16 %v171
      %v173 = vunpack.c.h.bf16 %v171
      %v174 = vld [vmem:[%s1] sm:$0x3]
      %v176 = vlaneseq
      %v177 = vshrl.u32 %v176, 7
      %v178 = vsub.s32 0, %v177
      %v179 = vrot.slane %v174, %v178
      %v180 = vlaneseq
      %v181 = vshrl.u32 %v180, 7
      %v182 = vsub.s32 1, %v181
      %v183 = vrot.slane %v174, %v182
      %v186 = vmul.f32 %v172, %v179
      %v187 = vmul.f32 %v173, %v183
      %v188 = vld [vmem:[%s2] sm:$0x3]
      %v190 = vlaneseq
      %v191 = vshrl.u32 %v190, 7
      %v192 = vsub.s32 0, %v191
      %v193 = vrot.slane %v188, %v192
      %v194 = vlaneseq
      %v195 = vshrl.u32 %v194, 7
      %v196 = vsub.s32 1, %v195
      %v197 = vrot.slane %v188, %v196
      %v200 = vadd.f32 %v186, %v193
      %v201 = vadd.f32 %v187, %v197
      %vm202 = vcmp.ge.f32.partialorder %v200, 0.0
      %vm203 = vcmp.ge.f32.partialorder %v201, 0.0
      %v204 = vmul.f32 %v200, 0.2
      %v205 = vmul.f32 %v201, 0.2
      %v206 = vsel %vm202, %v200, %v204
      %v207 = vsel %vm203, %v201, %v205
      %208 = vst [vmem:[%s170] sm:$0xff] %v206
      %209 = vst [vmem:[%s170 + $0x8] sm:$0xff] %v207
      %p210 = scmp.lt.s32.totalorder %s14, 1
      %s211 = scalar_select %p210, %s14, 1
      %s212 = smul.addr %s211, 2
      %s213 = smul.addr %s212, 8
      %s214 = scalar_lea.vmem %s3, %s213
      // Predicated region
      $region33: #{blocks_forward.3} parent=31 // pred_check
        %p215 = pneg %p100
      $region34: #{blocks_forward.3} parent=31 // pred_check_branch
        %217 = sbr.rel (%p215) target = $region36
      $region35: #{blocks_forward.3} parent=31 // pred_region
        _
      $region36: #{blocks_forward.3} parent=31 // pred_fallthru
        _
    $region32: #{blocks_forward.3} parent=5 // pred_fallthru
      _
    %p218 = scmp.le.s32.totalorder 2, %s9
    // Predicated region
    $region37: #{blocks_forward.3} parent=5 // pred_check
      %p219 = pneg %p218
    $region38: #{blocks_forward.3} parent=5 // pred_check_branch
      %221 = sbr.rel (%p219) target = $region40
    $region39: #{blocks_forward.3} parent=5 // pred_region
      %s222 = ssub.s32 %s9, 2
      // Predicated region
      $region41: #{blocks_forward.3} parent=39 // pred_check
        %p223 = pneg %p106
      $region42: #{blocks_forward.3} parent=39 // pred_check_branch
        %225 = sbr.rel (%p223) target = $region44
      $region43: #{blocks_forward.3} parent=39 // pred_region
        %p226 = scmp.lt.s32.totalorder %s15, 1
        %s227 = scalar_select %p226, %s15, 1
        %s228 = smul.addr %s227, 2
        %s229 = smul.addr %s228, 8
        %s230 = scalar_lea.vmem %s3, %s229
      $region44: #{blocks_forward.3} parent=39 // pred_fallthru
        _
    $region40: #{blocks_forward.3} parent=5 // pred_fallthru
      _
  $region6: #{blocks_forward.3} parent=0 // loop_footer
    %s13 = sadd.s32 1, %s9
  $region7: #{blocks_forward.3} parent=0 // loop_footer_branch
    %8 = sbr.rel target = $region3
  $region8: #{blocks_forward.3} parent=0 // loop_exit
    _

// kernel: blocks_forward.2
$region0: #{blocks_forward.2}
  #allocation0 [shape = 'u32[]', space=smem, size = 0x4, offset = 0x4, fixed_abs, tag = 'smem constant byte address 0x4 - core index']
  #allocation1 [shape = 'u32[144,128]{1,0:T(1,128)}', space=vmem, size = 0x12000, scoped, tag = 'internal scratch']
  %s0 = inlined_call_operand.vmem [shape: bf16[16,1152], index: 0, kind: input, shape index: {}]
  %s1 = inlined_call_operand.vmem [shape: bf16[1152,256], index: 1, kind: input, shape index: {}]
  %s2 = inlined_call_operand.vmem [shape: bf16[16,256], index: 2, kind: output, shape index: {0}]
  %s3 = inlined_call_operand.vmem [shape: f32[2,1,256], index: 3, kind: output, shape index: {1}]
  %s4 = inlined_call_operand.vmem [shape: f32[2,1,256], index: 4, kind: output, shape index: {2}]
  %5 = xla_tuple %s2, %s3, %s4
  %s6 = sld [smem:[#allocation0]]
  $region61: #{blocks_forward.2} parent=0
    _
  %s8 = ssub.s32 1, %s6
  %s9 = scalar_select 0, %s8, %s6
  loop: start=0, step=1, limit=4
  $region2: #{blocks_forward.2} parent=0 // loop_pre_header
    _
  $region3: #{blocks_forward.2} parent=0 // loop_header
    %s11 = sphi 0, %s15
    %p12 = scmp.ge.s32.totalorder %s11, 4
    %s18 = sphi 0, %s30
    %s19 = sphi 0, %s26
    %s20 = sphi 0, %s18
    %s21 = sphi 0, %s19
    %s22 = sphi 0, %s20
    %s23 = sphi 0, %s21
    %s35 = sphi 0, %s37
    %s38 = sphi 0, %s35
    %s39 = sphi 0, %s38
    %s55 = sphi 0, %s39
    %s59 = sphi 0, %s59
    %s61 = sphi 0, %s59
    %s62 = sphi 0, %s61
    %s76 = sphi 0, %s62
    %s84 = sphi 0, %s86
    %s87 = sphi 0, %s84
    %s88 = sphi 0, %s87
    %s104 = sphi 0, %s88
    %s110 = sphi 0, %s112
    %s113 = sphi 0, %s110
    %s114 = sphi 0, %s113
    %s130 = sphi 0, %s114
    %s136 = sphi 0, %s138
    %s139 = sphi 0, %s136
    %s140 = sphi 0, %s139
    %s156 = sphi 0, %s140
  $region4: #{blocks_forward.2} parent=0 // loop_header_branch
    %14 = sbr.rel (%p12) target = $region8
  $region5: #{blocks_forward.2} parent=0 // loop_body
    %s16 = ssub.s32 %s11, 1
    %s17 = ssub.s32 %s11, 2
    %s24 = sadd.s32 1, %s19
    %p25 = scmp.ge.s32.totalorder %s24, 1
    %s26 = scalar_select %p25, 0, %s24
    %s27 = sadd.s32 1, %s18
    %s28 = scalar_select %p25, %s27, %s18
    %p29 = scmp.ge.s32.totalorder %s28, 2
    %s30 = scalar_select %p29, 0, %s28
    %s31 = sadd.s32 %s18, %s19
    %s32 = sadd.s32 %s30, %s26
    %s33 = ssub.s32 %s31, %s32
    %p34 = scmp.eq.s32.totalorder %s33, 0
    %s36 = sadd.s32 %s35, 1
    %s37 = scalar_select %p34, %s35, %s36
    %p40 = pneg %p34
    %p41 = scmp.eq.s32.totalorder %s11, 1
    %p42 = por %p40, %p41
    %p43 = scmp.ne.s32.totalorder %s35, %s38
    %p44 = scmp.eq.s32.totalorder %s11, 0
    %p45 = por %p43, %p44
    %p46 = scmp.ne.s32.totalorder %s35, %s38
    %p47 = scmp.eq.s32.totalorder %s16, 1
    %p48 = por %p46, %p47
    %p49 = scmp.ne.s32.totalorder %s38, %s39
    %p50 = scmp.eq.s32.totalorder %s16, 0
    %p51 = por %p49, %p50
    %p52 = scmp.ne.s32.totalorder %s38, %s39
    %p53 = scmp.eq.s32.totalorder %s17, 1
    %p54 = por %p52, %p53
    %p56 = scmp.ne.s32.totalorder %s39, %s55
    %p57 = scmp.eq.s32.totalorder %s17, 0
    %p58 = por %p56, %p57
    %s60 = sadd.s32 %s59, 1
    %p63 = scmp.eq.s32.totalorder %s11, 1
    %p64 = scmp.ne.s32.totalorder %s59, %s61
    %p65 = scmp.eq.s32.totalorder %s11, 0
    %p66 = por %p64, %p65
    %p67 = scmp.ne.s32.totalorder %s59, %s61
    %p68 = scmp.eq.s32.totalorder %s16, 1
    %p69 = por %p67, %p68
    %p70 = scmp.ne.s32.totalorder %s61, %s62
    %p71 = scmp.eq.s32.totalorder %s16, 0
    %p72 = por %p70, %p71
    %p73 = scmp.ne.s32.totalorder %s61, %s62
    %p74 = scmp.eq.s32.totalorder %s17, 1
    %p75 = por %p73, %p74
    %p77 = scmp.ne.s32.totalorder %s62, %s76
    %p78 = scmp.eq.s32.totalorder %s17, 0
    %p79 = por %p77, %p78
    %s80 = sadd.s32 %s18, %s19
    %s81 = sadd.s32 %s30, %s26
    %s82 = ssub.s32 %s80, %s81
    %p83 = scmp.eq.s32.totalorder %s82, 0
    %s85 = sadd.s32 %s84, 1
    %s86 = scalar_select %p83, %s84, %s85
    %p89 = pneg %p83
    %p90 = scmp.eq.s32.totalorder %s11, 1
    %p91 = por %p89, %p90
    %p92 = scmp.ne.s32.totalorder %s84, %s87
    %p93 = scmp.eq.s32.totalorder %s11, 0
    %p94 = por %p92, %p93
    %p95 = scmp.ne.s32.totalorder %s84, %s87
    %p96 = scmp.eq.s32.totalorder %s16, 1
    %p97 = por %p95, %p96
    %p98 = scmp.ne.s32.totalorder %s87, %s88
    %p99 = scmp.eq.s32.totalorder %s16, 0
    %p100 = por %p98, %p99
    %p101 = scmp.ne.s32.totalorder %s87, %s88
    %p102 = scmp.eq.s32.totalorder %s17, 1
    %p103 = por %p101, %p102
    %p105 = scmp.ne.s32.totalorder %s88, %s104
    %p106 = scmp.eq.s32.totalorder %s17, 0
    %p107 = por %p105, %p106
    %s108 = ssub.s32 %s18, %s30
    %p109 = scmp.eq.s32.totalorder %s108, 0
    %s111 = sadd.s32 %s110, 1
    %s112 = scalar_select %p109, %s110, %s111
    %p115 = pneg %p109
    %p116 = scmp.eq.s32.totalorder %s11, 1
    %p117 = por %p115, %p116
    %p118 = scmp.ne.s32.totalorder %s110, %s113
    %p119 = scmp.eq.s32.totalorder %s11, 0
    %p120 = por %p118, %p119
    %p121 = scmp.ne.s32.totalorder %s110, %s113
    %p122 = scmp.eq.s32.totalorder %s16, 1
    %p123 = por %p121, %p122
    %p124 = scmp.ne.s32.totalorder %s113, %s114
    %p125 = scmp.eq.s32.totalorder %s16, 0
    %p126 = por %p124, %p125
    %p127 = scmp.ne.s32.totalorder %s113, %s114
    %p128 = scmp.eq.s32.totalorder %s17, 1
    %p129 = por %p127, %p128
    %p131 = scmp.ne.s32.totalorder %s114, %s130
    %p132 = scmp.eq.s32.totalorder %s17, 0
    %p133 = por %p131, %p132
    %s134 = ssub.s32 %s18, %s30
    %p135 = scmp.eq.s32.totalorder %s134, 0
    %s137 = sadd.s32 %s136, 1
    %s138 = scalar_select %p135, %s136, %s137
    %p141 = pneg %p135
    %p142 = scmp.eq.s32.totalorder %s11, 1
    %p143 = por %p141, %p142
    %p144 = scmp.ne.s32.totalorder %s136, %s139
    %p145 = scmp.eq.s32.totalorder %s11, 0
    %p146 = por %p144, %p145
    %p147 = scmp.ne.s32.totalorder %s136, %s139
    %p148 = scmp.eq.s32.totalorder %s16, 1
    %p149 = por %p147, %p148
    %p150 = scmp.ne.s32.totalorder %s139, %s140
    %p151 = scmp.eq.s32.totalorder %s16, 0
    %p152 = por %p150, %p151
    %p153 = scmp.ne.s32.totalorder %s139, %s140
    %p154 = scmp.eq.s32.totalorder %s17, 1
    %p155 = por %p153, %p154
    %p157 = scmp.ne.s32.totalorder %s140, %s156
    %p158 = scmp.eq.s32.totalorder %s17, 0
    %p159 = por %p157, %p158
    %p160 = scmp.le.s32.totalorder 1, %s11
    %p161 = scmp.lt.s32.totalorder %s11, 3
    %p162 = pnand %p160, %p161
    %p163 = pneg %p162
    // Predicated region
    $region9: #{blocks_forward.2} parent=5 // pred_check
      _
    $region10: #{blocks_forward.2} parent=5 // pred_check_branch
      %165 = sbr.rel (%p162) target = $region12
    $region11: #{blocks_forward.2} parent=5 // pred_region
      %s166 = ssub.s32 %s11, 1
      // Predicated region
      $region13: #{blocks_forward.2} parent=11 // pred_check
        %p167 = pneg %p72
      $region14: #{blocks_forward.2} parent=11 // pred_check_branch
        %169 = sbr.rel (%p167) target = $region16
      $region15: #{blocks_forward.2} parent=11 // pred_region
        _
      $region16: #{blocks_forward.2} parent=11 // pred_fallthru
        _
    $region12: #{blocks_forward.2} parent=5 // pred_fallthru
      _
    %p170 = scmp.lt.s32.totalorder %s11, 2
    // Predicated region
    $region17: #{blocks_forward.2} parent=5 // pred_check
      %p171 = pneg %p170
    $region18: #{blocks_forward.2} parent=5 // pred_check_branch
      %173 = sbr.rel (%p171) target = $region20
    $region19: #{blocks_forward.2} parent=5 // pred_region
      // Predicated region
      $region21: #{blocks_forward.2} parent=19 // pred_check
        %p174 = pneg %p45
      $region22: #{blocks_forward.2} parent=19 // pred_check_branch
        %176 = sbr.rel (%p174) target = $region24
      $region23: #{blocks_forward.2} parent=19 // pred_region
        %s177 = sadd.s32 %s18, %s19
        %p178 = scmp.lt.s32.totalorder %s177, 1
        %s179 = scalar_select %p178, %s177, 1
        %s180 = smul.addr %s179, 9
        %s181 = smul.addr %s180, 4
        %s182 = scalar_lea.vmem %s0, %s181
        %s183 = sadd.s32 %s18, %s19
      $region24: #{blocks_forward.2} parent=19 // pred_fallthru
        _
    $region20: #{blocks_forward.2} parent=5 // pred_fallthru
      _
    %p184 = scmp.le.s32.totalorder 1, %s11
    %p185 = scmp.lt.s32.totalorder %s11, 3
    %p186 = pnand %p184, %p185
    %p187 = pneg %p186
    // Predicated region
    $region25: #{blocks_forward.2} parent=5 // pred_check
      _
    $region26: #{blocks_forward.2} parent=5 // pred_check_branch
      %189 = sbr.rel (%p186) target = $region28
    $region27: #{blocks_forward.2} parent=5 // pred_region
      %s190 = ssub.s32 %s11, 1
      %s191 = sadd.s32 %s20, %s21
      %p192 = scmp.lt.s32.totalorder %s191, 1
      %s193 = scalar_select %p192, %s191, 1
      %s194 = smul.addr %s193, 9
      %s195 = smul.addr %s194, 4
      %s196 = scalar_lea.vmem %s0, %s195
      %p197 = pneg %p51
      %p198 = pneg %p48
      %p199 = pneg %p72
      %p200 = pneg %p69
      %p201 = pneg %p100
      %p202 = pneg %p97
      %s203 = sadd.s32 %s20, %s21
      %p204 = scmp.lt.s32.totalorder %s203, 1
      %s205 = scalar_select %p204, %s203, 1
      %s206 = smul.addr %s205, 2
      %s207 = smul.addr %s206, 4
      %s208 = scalar_lea.vmem %s2, %s207
      %p209 = pneg %p126
      %p210 = pneg %p123
      %p211 = scmp.lt.s32.totalorder %s20, 1
      %s212 = scalar_select %p211, %s20, 1
      %s213 = smul.addr %s212, 2
      %s214 = scalar_lea.vmem %s3, %s213
      %p215 = pneg %p152
      %p216 = pneg %p149
      %p217 = scmp.lt.s32.totalorder %s20, 1
      %s218 = scalar_select %p217, %s20, 1
      %s219 = smul.addr %s218, 2
      %s220 = scalar_lea.vmem %s4, %s219
      %s221 = sadd.s32 %s20, %s21
      %p222 = scmp.lt.s32.totalorder %s221, 1
      %s223 = scalar_select %p222, %s221, 1
      %s224 = smul.addr %s223, 9
      %s225 = smul.addr %s224, 4
      %s226 = scalar_lea.vmem %s0, %s225
      %s227 = sadd.s32 %s20, %s21
      %s228 = sadd.s32 %s20, %s21
      %p229 = scmp.lt.s32.totalorder %s228, 1
      %s230 = scalar_select %p229, %s228, 1
      %s231 = smul.addr %s230, 2
      %s232 = smul.addr %s231, 4
      %s233 = scalar_lea.vmem %s2, %s232
      %s234 = sadd.s32 %s20, %s21
      %p235 = scmp.lt.s32.totalorder %s20, 1
      %s236 = scalar_select %p235, %s20, 1
      %s237 = smul.addr %s236, 2
      %s238 = scalar_lea.vmem %s3, %s237
      %p239 = scmp.lt.s32.totalorder %s20, 1
      %s240 = scalar_select %p239, %s20, 1
      %s241 = smul.addr %s240, 2
      %s242 = scalar_lea.vmem %s4, %s241
      %p244 = scmp.eq.s32.totalorder %s21, 0
      // Predicated region
      $region29: #{blocks_forward.2} parent=27 // pred_check
        %p245 = pneg %p244
      $region30: #{blocks_forward.2} parent=27 // pred_check_branch
        %247 = sbr.rel (%p245) target = $region32
      $region31: #{blocks_forward.2} parent=27 // pred_region
        %v248 = vlaneseq
        %vm249 = vcmp.ge.s32.totalorder %v248, 0
        %vm250 = vcmp.lt.s32.totalorder %v248, 256
        %vm251 = vmand %vm249, %vm250
        %252 = vst.msk [vmem:[%s238] sm:$0x3] %vm251, 0.0
        %253 = vst.msk [vmem:[%s242] sm:$0x3] %vm251, 0.0
      $region32: #{blocks_forward.2} parent=27 // pred_fallthru
        _
      %v254 = vld [vmem:[%s226] sm:$0xff]
      %v255 = vld [vmem:[%s226 + $0x8] sm:$0xff]
      %v256 = vld [vmem:[%s226 + $0x10] sm:$0xff]
      %v257 = vld [vmem:[%s226 + $0x18] sm:$0xff]
      %v258 = vld [vmem:[%s226 + $0x20] sm:$0xf]
      %v259 = vld [vmem:[%s1] sm:$0xff]
      %v260 = vld [vmem:[%s1 + $0x8] sm:$0xff]
      %v261 = vld [vmem:[%s1 + $0x10] sm:$0xff]
      %v262 = vld [vmem:[%s1 + $0x18] sm:$0xff]
      %v263 = vld [vmem:[%s1 + $0x20] sm:$0xff]
      %v264 = vld [vmem:[%s1 + $0x28] sm:$0xff]
      %v265 = vld [vmem:[%s1 + $0x30] sm:$0xff]
      %v266 = vld [vmem:[%s1 + $0x38] sm:$0xff]
      %v267 = vld [vmem:[%s1 + $0x40] sm:$0xff]
      %v268 = vld [vmem:[%s1 + $0x48] sm:$0xff]
      %v269 = vld [vmem:[%s1 + $0x50] sm:$0xff]
      %v270 = vld [vmem:[%s1 + $0x58] sm:$0xff]
      %v271 = vld [vmem:[%s1 + $0x60] sm:$0xff]
      %v272 = vld [vmem:[%s1 + $0x68] sm:$0xff]
      %v273 = vld [vmem:[%s1 + $0x70] sm:$0xff]
      %v274 = vld [vmem:[%s1 + $0x78] sm:$0xff]
      %v275 = vld [vmem:[%s1 + $0x80] sm:$0xff]
      %v276 = vld [vmem:[%s1 + $0x88] sm:$0xff]
      %v277 = vld [vmem:[%s1 + $0x90] sm:$0xff]
      %v278 = vld [vmem:[%s1 + $0x98] sm:$0xff]
      %v279 = vld [vmem:[%s1 + $0xa0] sm:$0xff]
      %v280 = vld [vmem:[%s1 + $0xa8] sm:$0xff]
      %v281 = vld [vmem:[%s1 + $0xb0] sm:$0xff]
      %v282 = vld [vmem:[%s1 + $0xb8] sm:$0xff]
      %v283 = vld [vmem:[%s1 + $0xc0] sm:$0xff]
      %v284 = vld [vmem:[%s1 + $0xc8] sm:$0xff]
      %v285 = vld [vmem:[%s1 + $0xd0] sm:$0xff]
      %v286 = vld [vmem:[%s1 + $0xd8] sm:$0xff]
      %v287 = vld [vmem:[%s1 + $0xe0] sm:$0xff]
      %v288 = vld [vmem:[%s1 + $0xe8] sm:$0xff]
      %v289 = vld [vmem:[%s1 + $0xf0] sm:$0xff]
      %v290 = vld [vmem:[%s1 + $0xf8] sm:$0xff]
      %v291 = vld [vmem:[%s1 + $0x100] sm:$0xff]
      %v292 = vld [vmem:[%s1 + $0x108] sm:$0xff]
      %v293 = vld [vmem:[%s1 + $0x110] sm:$0xff]
      %v294 = vld [vmem:[%s1 + $0x118] sm:$0xff]
      %v295 = vld [vmem:[%s1 + $0x120] sm:$0xff]
      %v296 = vld [vmem:[%s1 + $0x128] sm:$0xff]
      %v297 = vld [vmem:[%s1 + $0x130] sm:$0xff]
      %v298 = vld [vmem:[%s1 + $0x138] sm:$0xff]
      %v299 = vld [vmem:[%s1 + $0x140] sm:$0xff]
      %v300 = vld [vmem:[%s1 + $0x148] sm:$0xff]
      %v301 = vld [vmem:[%s1 + $0x150] sm:$0xff]
      %v302 = vld [vmem:[%s1 + $0x158] sm:$0xff]
      %v303 = vld [vmem:[%s1 + $0x160] sm:$0xff]
      %v304 = vld [vmem:[%s1 + $0x168] sm:$0xff]
      %v305 = vld [vmem:[%s1 + $0x170] sm:$0xff]
      %v306 = vld [vmem:[%s1 + $0x178] sm:$0xff]
      %v307 = vld [vmem:[%s1 + $0x180] sm:$0xff]
      %v308 = vld [vmem:[%s1 + $0x188] sm:$0xff]
      %v309 = vld [vmem:[%s1 + $0x190] sm:$0xff]
      %v310 = vld [vmem:[%s1 + $0x198] sm:$0xff]
      %v311 = vld [vmem:[%s1 + $0x1a0] sm:$0xff]
      %v312 = vld [vmem:[%s1 + $0x1a8] sm:$0xff]
      %v313 = vld [vmem:[%s1 + $0x1b0] sm:$0xff]
      %v314 = vld [vmem:[%s1 + $0x1b8] sm:$0xff]
      %v315 = vld [vmem:[%s1 + $0x1c0] sm:$0xff]
      %v316 = vld [vmem:[%s1 + $0x1c8] sm:$0xff]
      %v317 = vld [vmem:[%s1 + $0x1d0] sm:$0xff]
      %v318 = vld [vmem:[%s1 + $0x1d8] sm:$0xff]
      %v319 = vld [vmem:[%s1 + $0x1e0] sm:$0xff]
      %v320 = vld [vmem:[%s1 + $0x1e8] sm:$0xff]
      %v321 = vld [vmem:[%s1 + $0x1f0] sm:$0xff]
      %v322 = vld [vmem:[%s1 + $0x1f8] sm:$0xff]
      %v323 = vld [vmem:[%s1 + $0x200] sm:$0xff]
      %v324 = vld [vmem:[%s1 + $0x208] sm:$0xff]
      %v325 = vld [vmem:[%s1 + $0x210] sm:$0xff]
      %v326 = vld [vmem:[%s1 + $0x218] sm:$0xff]
      %v327 = vld [vmem:[%s1 + $0x220] sm:$0xff]
      %v328 = vld [vmem:[%s1 + $0x228] sm:$0xff]
      %v329 = vld [vmem:[%s1 + $0x230] sm:$0xff]
      %v330 = vld [vmem:[%s1 + $0x238] sm:$0xff]
      %v331 = vld [vmem:[%s1 + $0x240] sm:$0xff]
      %v332 = vld [vmem:[%s1 + $0x248] sm:$0xff]
      %v333 = vld [vmem:[%s1 + $0x250] sm:$0xff]
      %v334 = vld [vmem:[%s1 + $0x258] sm:$0xff]
      %v335 = vld [vmem:[%s1 + $0x260] sm:$0xff]
      %v336 = vld [vmem:[%s1 + $0x268] sm:$0xff]
      %v337 = vld [vmem:[%s1 + $0x270] sm:$0xff]
      %v338 = vld [vmem:[%s1 + $0x278] sm:$0xff]
      %v339 = vld [vmem:[%s1 + $0x280] sm:$0xff]
      %v340 = vld [vmem:[%s1 + $0x288] sm:$0xff]
      %v341 = vld [vmem:[%s1 + $0x290] sm:$0xff]
      %v342 = vld [vmem:[%s1 + $0x298] sm:$0xff]
      %v343 = vld [vmem:[%s1 + $0x2a0] sm:$0xff]
      %v344 = vld [vmem:[%s1 + $0x2a8] sm:$0xff]
      %v345 = vld [vmem:[%s1 + $0x2b0] sm:$0xff]
      %v346 = vld [vmem:[%s1 + $0x2b8] sm:$0xff]
      %v347 = vld [vmem:[%s1 + $0x2c0] sm:$0xff]
      %v348 = vld [vmem:[%s1 + $0x2c8] sm:$0xff]
      %v349 = vld [vmem:[%s1 + $0x2d0] sm:$0xff]
      %v350 = vld [vmem:[%s1 + $0x2d8] sm:$0xff]
      %v351 = vld [vmem:[%s1 + $0x2e0] sm:$0xff]
      %v352 = vld [vmem:[%s1 + $0x2e8] sm:$0xff]
      %v353 = vld [vmem:[%s1 + $0x2f0] sm:$0xff]
      %v354 = vld [vmem:[%s1 + $0x2f8] sm:$0xff]
      %v355 = vld [vmem:[%s1 + $0x300] sm:$0xff]
      %v356 = vld [vmem:[%s1 + $0x308] sm:$0xff]
      %v357 = vld [vmem:[%s1 + $0x310] sm:$0xff]
      %v358 = vld [vmem:[%s1 + $0x318] sm:$0xff]
      %v359 = vld [vmem:[%s1 + $0x320] sm:$0xff]
      %v360 = vld [vmem:[%s1 + $0x328] sm:$0xff]
      %v361 = vld [vmem:[%s1 + $0x330] sm:$0xff]
      %v362 = vld [vmem:[%s1 + $0x338] sm:$0xff]
      %v363 = vld [vmem:[%s1 + $0x340] sm:$0xff]
      %v364 = vld [vmem:[%s1 + $0x348] sm:$0xff]
      %v365 = vld [vmem:[%s1 + $0x350] sm:$0xff]
      %v366 = vld [vmem:[%s1 + $0x358] sm:$0xff]
      %v367 = vld [vmem:[%s1 + $0x360] sm:$0xff]
      %v368 = vld [vmem:[%s1 + $0x368] sm:$0xff]
      %v369 = vld [vmem:[%s1 + $0x370] sm:$0xff]
      %v370 = vld [vmem:[%s1 + $0x378] sm:$0xff]
      %v371 = vld [vmem:[%s1 + $0x380] sm:$0xff]
      %v372 = vld [vmem:[%s1 + $0x388] sm:$0xff]
      %v373 = vld [vmem:[%s1 + $0x390] sm:$0xff]
      %v374 = vld [vmem:[%s1 + $0x398] sm:$0xff]
      %v375 = vld [vmem:[%s1 + $0x3a0] sm:$0xff]
      %v376 = vld [vmem:[%s1 + $0x3a8] sm:$0xff]
      %v377 = vld [vmem:[%s1 + $0x3b0] sm:$0xff]
      %v378 = vld [vmem:[%s1 + $0x3b8] sm:$0xff]
      %v379 = vld [vmem:[%s1 + $0x3c0] sm:$0xff]
      %v380 = vld [vmem:[%s1 + $0x3c8] sm:$0xff]
      %v381 = vld [vmem:[%s1 + $0x3d0] sm:$0xff]
      %v382 = vld [vmem:[%s1 + $0x3d8] sm:$0xff]
      %v383 = vld [vmem:[%s1 + $0x3e0] sm:$0xff]
      %v384 = vld [vmem:[%s1 + $0x3e8] sm:$0xff]
      %v385 = vld [vmem:[%s1 + $0x3f0] sm:$0xff]
      %v386 = vld [vmem:[%s1 + $0x3f8] sm:$0xff]
      %v387 = vld [vmem:[%s1 + $0x400] sm:$0xff]
      %v388 = vld [vmem:[%s1 + $0x408] sm:$0xff]
      %v389 = vld [vmem:[%s1 + $0x410] sm:$0xff]
      %v390 = vld [vmem:[%s1 + $0x418] sm:$0xff]
      %v391 = vld [vmem:[%s1 + $0x420] sm:$0xff]
      %v392 = vld [vmem:[%s1 + $0x428] sm:$0xff]
      %v393 = vld [vmem:[%s1 + $0x430] sm:$0xff]
      %v394 = vld [vmem:[%s1 + $0x438] sm:$0xff]
      %v395 = vld [vmem:[%s1 + $0x440] sm:$0xff]
      %v396 = vld [vmem:[%s1 + $0x448] sm:$0xff]
      %v397 = vld [vmem:[%s1 + $0x450] sm:$0xff]
      %v398 = vld [vmem:[%s1 + $0x458] sm:$0xff]
      %v399 = vld [vmem:[%s1 + $0x460] sm:$0xff]
      %v400 = vld [vmem:[%s1 + $0x468] sm:$0xff]
      %v401 = vld [vmem:[%s1 + $0x470] sm:$0xff]
      %v402 = vld [vmem:[%s1 + $0x478] sm:$0xff]
      %v408 = vunpack.c.l.b16 %v254
      %v409 = vunpack.c.h.b16 %v254
      %v410 = vunpack.c.l.b16 %v255
      %v411 = vunpack.c.h.b16 %v255
      %v412 = vunpack.c.l.b16 %v256
      %v413 = vunpack.c.h.b16 %v256
      %v414 = vunpack.c.l.b16 %v257
      %v415 = vunpack.c.h.b16 %v257
      %v416 = vunpack.c.l.b16 %v258
      %v417 = vpack.c.b16 %v408, %v408
      %v418 = vpack.c.b16 %v409, %v409
      %v419 = vpack.c.b16 %v410, %v410
      %v420 = vpack.c.b16 %v411, %v411
      %v421 = vpack.c.b16 %v412, %v412
      %v422 = vpack.c.b16 %v413, %v413
      %v423 = vpack.c.b16 %v414, %v414
      %v424 = vpack.c.b16 %v415, %v415
      %v425 = vpack.c.b16 %v416, %v416
      %v579 = vunpack.c.l.b16 %v259
      %v580 = vunpack.c.h.b16 %v259
      %v581 = vunpack.c.l.b16 %v260
      %v582 = vunpack.c.h.b16 %v260
      %v583 = vunpack.c.l.b16 %v261
      %v584 = vunpack.c.h.b16 %v261
      %v585 = vunpack.c.l.b16 %v262
      %v586 = vunpack.c.h.b16 %v262
      %v587 = vunpack.c.l.b16 %v263
      %v588 = vunpack.c.h.b16 %v263
      %v589 = vunpack.c.l.b16 %v264
      %v590 = vunpack.c.h.b16 %v264
      %v591 = vunpack.c.l.b16 %v265
      %v592 = vunpack.c.h.b16 %v265
      %v593 = vunpack.c.l.b16 %v266
      %v594 = vunpack.c.h.b16 %v266
      %v595 = vunpack.c.l.b16 %v267
      %v596 = vunpack.c.h.b16 %v267
      %v597 = vunpack.c.l.b16 %v268
      %v598 = vunpack.c.h.b16 %v268
      %v599 = vunpack.c.l.b16 %v269
      %v600 = vunpack.c.h.b16 %v269
      %v601 = vunpack.c.l.b16 %v270
      %v602 = vunpack.c.h.b16 %v270
      %v603 = vunpack.c.l.b16 %v271
      %v604 = vunpack.c.h.b16 %v271
      %v605 = vunpack.c.l.b16 %v272
      %v606 = vunpack.c.h.b16 %v272
      %v607 = vunpack.c.l.b16 %v273
      %v608 = vunpack.c.h.b16 %v273
      %v609 = vunpack.c.l.b16 %v274
      %v610 = vunpack.c.h.b16 %v274
      %v611 = vunpack.c.l.b16 %v275
      %v612 = vunpack.c.h.b16 %v275
      %v613 = vunpack.c.l.b16 %v276
      %v614 = vunpack.c.h.b16 %v276
      %v615 = vunpack.c.l.b16 %v277
      %v616 = vunpack.c.h.b16 %v277
      %v617 = vunpack.c.l.b16 %v278
      %v618 = vunpack.c.h.b16 %v278
      %v619 = vunpack.c.l.b16 %v279
      %v620 = vunpack.c.h.b16 %v279
      %v621 = vunpack.c.l.b16 %v280
      %v622 = vunpack.c.h.b16 %v280
      %v623 = vunpack.c.l.b16 %v281
      %v624 = vunpack.c.h.b16 %v281
      %v625 = vunpack.c.l.b16 %v282
      %v626 = vunpack.c.h.b16 %v282
      %v627 = vunpack.c.l.b16 %v283
      %v628 = vunpack.c.h.b16 %v283
      %v629 = vunpack.c.l.b16 %v284
      %v630 = vunpack.c.h.b16 %v284
      %v631 = vunpack.c.l.b16 %v285
      %v632 = vunpack.c.h.b16 %v285
      %v633 = vunpack.c.l.b16 %v286
      %v634 = vunpack.c.h.b16 %v286
      %v635 = vunpack.c.l.b16 %v287
      %v636 = vunpack.c.h.b16 %v287
      %v637 = vunpack.c.l.b16 %v288
      %v638 = vunpack.c.h.b16 %v288
      %v639 = vunpack.c.l.b16 %v289
      %v640 = vunpack.c.h.b16 %v289
      %v641 = vunpack.c.l.b16 %v290
      %v642 = vunpack.c.h.b16 %v290
      %v643 = vunpack.c.l.b16 %v291
      %v644 = vunpack.c.h.b16 %v291
      %v645 = vunpack.c.l.b16 %v292
      %v646 = vunpack.c.h.b16 %v292
      %v647 = vunpack.c.l.b16 %v293
      %v648 = vunpack.c.h.b16 %v293
      %v649 = vunpack.c.l.b16 %v294
      %v650 = vunpack.c.h.b16 %v294
      %v651 = vunpack.c.l.b16 %v295
      %v652 = vunpack.c.h.b16 %v295
      %v653 = vunpack.c.l.b16 %v296
      %v654 = vunpack.c.h.b16 %v296
      %v655 = vunpack.c.l.b16 %v297
      %v656 = vunpack.c.h.b16 %v297
      %v657 = vunpack.c.l.b16 %v298
      %v658 = vunpack.c.h.b16 %v298
      %v659 = vunpack.c.l.b16 %v299
      %v660 = vunpack.c.h.b16 %v299
      %v661 = vunpack.c.l.b16 %v300
      %v662 = vunpack.c.h.b16 %v300
      %v663 = vunpack.c.l.b16 %v301
      %v664 = vunpack.c.h.b16 %v301
      %v665 = vunpack.c.l.b16 %v302
      %v666 = vunpack.c.h.b16 %v302
      %v667 = vunpack.c.l.b16 %v303
      %v668 = vunpack.c.h.b16 %v303
      %v669 = vunpack.c.l.b16 %v304
      %v670 = vunpack.c.h.b16 %v304
      %v671 = vunpack.c.l.b16 %v305
      %v672 = vunpack.c.h.b16 %v305
      %v673 = vunpack.c.l.b16 %v306
      %v674 = vunpack.c.h.b16 %v306
      %v675 = vunpack.c.l.b16 %v307
      %v676 = vunpack.c.h.b16 %v307
      %v677 = vunpack.c.l.b16 %v308
      %v678 = vunpack.c.h.b16 %v308
      %v679 = vunpack.c.l.b16 %v309
      %v680 = vunpack.c.h.b16 %v309
      %v681 = vunpack.c.l.b16 %v310
      %v682 = vunpack.c.h.b16 %v310
      %v683 = vunpack.c.l.b16 %v311
      %v684 = vunpack.c.h.b16 %v311
      %v685 = vunpack.c.l.b16 %v312
      %v686 = vunpack.c.h.b16 %v312
      %v687 = vunpack.c.l.b16 %v313
      %v688 = vunpack.c.h.b16 %v313
      %v689 = vunpack.c.l.b16 %v314
      %v690 = vunpack.c.h.b16 %v314
      %v691 = vunpack.c.l.b16 %v315
      %v692 = vunpack.c.h.b16 %v315
      %v693 = vunpack.c.l.b16 %v316
      %v694 = vunpack.c.h.b16 %v316
      %v695 = vunpack.c.l.b16 %v317
      %v696 = vunpack.c.h.b16 %v317
      %v697 = vunpack.c.l.b16 %v318
      %v698 = vunpack.c.h.b16 %v318
      %v699 = vunpack.c.l.b16 %v319
      %v700 = vunpack.c.h.b16 %v319
      %v701 = vunpack.c.l.b16 %v320
      %v702 = vunpack.c.h.b16 %v320
      %v703 = vunpack.c.l.b16 %v321
      %v704 = vunpack.c.h.b16 %v321
      %v705 = vunpack.c.l.b16 %v322
      %v706 = vunpack.c.h.b16 %v322
      %v707 = vunpack.c.l.b16 %v323
      %v708 = vunpack.c.h.b16 %v323
      %v709 = vunpack.c.l.b16 %v324
      %v710 = vunpack.c.h.b16 %v324
      %v711 = vunpack.c.l.b16 %v325
      %v712 = vunpack.c.h.b16 %v325
      %v713 = vunpack.c.l.b16 %v326
      %v714 = vunpack.c.h.b16 %v326
      %v715 = vunpack.c.l.b16 %v327
      %v716 = vunpack.c.h.b16 %v327
      %v717 = vunpack.c.l.b16 %v328
      %v718 = vunpack.c.h.b16 %v328
      %v719 = vunpack.c.l.b16 %v329
      %v720 = vunpack.c.h.b16 %v329
      %v721 = vunpack.c.l.b16 %v330
      %v722 = vunpack.c.h.b16 %v330
      %v723 = vunpack.c.l.b16 %v331
      %v724 = vunpack.c.h.b16 %v331
      %v725 = vunpack.c.l.b16 %v332
      %v726 = vunpack.c.h.b16 %v332
      %v727 = vunpack.c.l.b16 %v333
      %v728 = vunpack.c.h.b16 %v333
      %v729 = vunpack.c.l.b16 %v334
      %v730 = vunpack.c.h.b16 %v334
      %v731 = vunpack.c.l.b16 %v335
      %v732 = vunpack.c.h.b16 %v335
      %v733 = vunpack.c.l.b16 %v336
      %v734 = vunpack.c.h.b16 %v336
      %v735 = vunpack.c.l.b16 %v337
      %v736 = vunpack.c.h.b16 %v337
      %v737 = vunpack.c.l.b16 %v338
      %v738 = vunpack.c.h.b16 %v338
      %v739 = vunpack.c.l.b16 %v339
      %v740 = vunpack.c.h.b16 %v339
      %v741 = vunpack.c.l.b16 %v340
      %v742 = vunpack.c.h.b16 %v340
      %v743 = vunpack.c.l.b16 %v341
      %v744 = vunpack.c.h.b16 %v341
      %v745 = vunpack.c.l.b16 %v342
      %v746 = vunpack.c.h.b16 %v342
      %v747 = vunpack.c.l.b16 %v343
      %v748 = vunpack.c.h.b16 %v343
      %v749 = vunpack.c.l.b16 %v344
      %v750 = vunpack.c.h.b16 %v344
      %v751 = vunpack.c.l.b16 %v345
      %v752 = vunpack.c.h.b16 %v345
      %v753 = vunpack.c.l.b16 %v346
      %v754 = vunpack.c.h.b16 %v346
      %v755 = vunpack.c.l.b16 %v347
      %v756 = vunpack.c.h.b16 %v347
      %v757 = vunpack.c.l.b16 %v348
      %v758 = vunpack.c.h.b16 %v348
      %v759 = vunpack.c.l.b16 %v349
      %v760 = vunpack.c.h.b16 %v349
      %v761 = vunpack.c.l.b16 %v350
      %v762 = vunpack.c.h.b16 %v350
      %v763 = vunpack.c.l.b16 %v351
      %v764 = vunpack.c.h.b16 %v351
      %v765 = vunpack.c.l.b16 %v352
      %v766 = vunpack.c.h.b16 %v352
      %v767 = vunpack.c.l.b16 %v353
      %v768 = vunpack.c.h.b16 %v353
      %v769 = vunpack.c.l.b16 %v354
      %v770 = vunpack.c.h.b16 %v354
      %v771 = vunpack.c.l.b16 %v355
      %v772 = vunpack.c.h.b16 %v355
      %v773 = vunpack.c.l.b16 %v356
      %v774 = vunpack.c.h.b16 %v356
      %v775 = vunpack.c.l.b16 %v357
      %v776 = vunpack.c.h.b16 %v357
      %v777 = vunpack.c.l.b16 %v358
      %v778 = vunpack.c.h.b16 %v358
      %v779 = vunpack.c.l.b16 %v359
      %v780 = vunpack.c.h.b16 %v359
      %v781 = vunpack.c.l.b16 %v360
      %v782 = vunpack.c.h.b16 %v360
      %v783 = vunpack.c.l.b16 %v361
      %v784 = vunpack.c.h.b16 %v361
      %v785 = vunpack.c.l.b16 %v362
      %v786 = vunpack.c.h.b16 %v362
      %v787 = vunpack.c.l.b16 %v363
      %v788 = vunpack.c.h.b16 %v363
      %v789 = vunpack.c.l.b16 %v364
      %v790 = vunpack.c.h.b16 %v364
      %v791 = vunpack.c.l.b16 %v365
      %v792 = vunpack.c.h.b16 %v365
      %v793 = vunpack.c.l.b16 %v366
      %v794 = vunpack.c.h.b16 %v366
      %v795 = vunpack.c.l.b16 %v367
      %v796 = vunpack.c.h.b16 %v367
      %v797 = vunpack.c.l.b16 %v368
      %v798 = vunpack.c.h.b16 %v368
      %v799 = vunpack.c.l.b16 %v369
      %v800 = vunpack.c.h.b16 %v369
      %v801 = vunpack.c.l.b16 %v370
      %v802 = vunpack.c.h.b16 %v370
      %v803 = vunpack.c.l.b16 %v371
      %v804 = vunpack.c.h.b16 %v371
      %v805 = vunpack.c.l.b16 %v372
      %v806 = vunpack.c.h.b16 %v372
      %v807 = vunpack.c.l.b16 %v373
      %v808 = vunpack.c.h.b16 %v373
      %v809 = vunpack.c.l.b16 %v374
      %v810 = vunpack.c.h.b16 %v374
      %v811 = vunpack.c.l.b16 %v375
      %v812 = vunpack.c.h.b16 %v375
      %v813 = vunpack.c.l.b16 %v376
      %v814 = vunpack.c.h.b16 %v376
      %v815 = vunpack.c.l.b16 %v377
      %v816 = vunpack.c.h.b16 %v377
      %v817 = vunpack.c.l.b16 %v378
      %v818 = vunpack.c.h.b16 %v378
      %v819 = vunpack.c.l.b16 %v379
      %v820 = vunpack.c.h.b16 %v379
      %v821 = vunpack.c.l.b16 %v380
      %v822 = vunpack.c.h.b16 %v380
      %v823 = vunpack.c.l.b16 %v381
      %v824 = vunpack.c.h.b16 %v381
      %v825 = vunpack.c.l.b16 %v382
      %v826 = vunpack.c.h.b16 %v382
      %v827 = vunpack.c.l.b16 %v383
      %v828 = vunpack.c.h.b16 %v383
      %v829 = vunpack.c.l.b16 %v384
      %v830 = vunpack.c.h.b16 %v384
      %v831 = vunpack.c.l.b16 %v385
      %v832 = vunpack.c.h.b16 %v385
      %v833 = vunpack.c.l.b16 %v386
      %v834 = vunpack.c.h.b16 %v386
      %v835 = vunpack.c.l.b16 %v387
      %v836 = vunpack.c.h.b16 %v387
      %v837 = vunpack.c.l.b16 %v388
      %v838 = vunpack.c.h.b16 %v388
      %v839 = vunpack.c.l.b16 %v389
      %v840 = vunpack.c.h.b16 %v389
      %v841 = vunpack.c.l.b16 %v390
      %v842 = vunpack.c.h.b16 %v390
      %v843 = vunpack.c.l.b16 %v391
      %v844 = vunpack.c.h.b16 %v391
      %v845 = vunpack.c.l.b16 %v392
      %v846 = vunpack.c.h.b16 %v392
      %v847 = vunpack.c.l.b16 %v393
      %v848 = vunpack.c.h.b16 %v393
      %v849 = vunpack.c.l.b16 %v394
      %v850 = vunpack.c.h.b16 %v394
      %v851 = vunpack.c.l.b16 %v395
      %v852 = vunpack.c.h.b16 %v395
      %v853 = vunpack.c.l.b16 %v396
      %v854 = vunpack.c.h.b16 %v396
      %v855 = vunpack.c.l.b16 %v397
      %v856 = vunpack.c.h.b16 %v397
      %v857 = vunpack.c.l.b16 %v398
      %v858 = vunpack.c.h.b16 %v398
      %v859 = vunpack.c.l.b16 %v399
      %v860 = vunpack.c.h.b16 %v399
      %v861 = vunpack.c.l.b16 %v400
      %v862 = vunpack.c.h.b16 %v400
      %v863 = vunpack.c.l.b16 %v401
      %v864 = vunpack.c.h.b16 %v401
      %v865 = vunpack.c.l.b16 %v402
      %v866 = vunpack.c.h.b16 %v402
      %v867 = vpack.c.b16 %v581, %v579
      %v868 = vpack.c.b16 %v582, %v580
      %v869 = vpack.c.b16 %v585, %v583
      %v870 = vpack.c.b16 %v586, %v584
      %v871 = vpack.c.b16 %v589, %v587
      %v872 = vpack.c.b16 %v590, %v588
      %v873 = vpack.c.b16 %v593, %v591
      %v874 = vpack.c.b16 %v594, %v592
      %v875 = vpack.c.b16 %v597, %v595
      %v876 = vpack.c.b16 %v598, %v596
      %v877 = vpack.c.b16 %v601, %v599
      %v878 = vpack.c.b16 %v602, %v600
      %v879 = vpack.c.b16 %v605, %v603
      %v880 = vpack.c.b16 %v606, %v604
      %v881 = vpack.c.b16 %v609, %v607
      %v882 = vpack.c.b16 %v610, %v608
      %v883 = vpack.c.b16 %v613, %v611
      %v884 = vpack.c.b16 %v614, %v612
      %v885 = vpack.c.b16 %v617, %v615
      %v886 = vpack.c.b16 %v618, %v616
      %v887 = vpack.c.b16 %v621, %v619
      %v888 = vpack.c.b16 %v622, %v620
      %v889 = vpack.c.b16 %v625, %v623
      %v890 = vpack.c.b16 %v626, %v624
      %v891 = vpack.c.b16 %v629, %v627
      %v892 = vpack.c.b16 %v630, %v628
      %v893 = vpack.c.b16 %v633, %v631
      %v894 = vpack.c.b16 %v634, %v632
      %v895 = vpack.c.b16 %v637, %v635
      %v896 = vpack.c.b16 %v638, %v636
      %v897 = vpack.c.b16 %v641, %v639
      %v898 = vpack.c.b16 %v642, %v640
      %v899 = vpack.c.b16 %v645, %v643
      %v900 = vpack.c.b16 %v646, %v644
      %v901 = vpack.c.b16 %v649, %v647
      %v902 = vpack.c.b16 %v650, %v648
      %v903 = vpack.c.b16 %v653, %v651
      %v904 = vpack.c.b16 %v654, %v652
      %v905 = vpack.c.b16 %v657, %v655
      %v906 = vpack.c.b16 %v658, %v656
      %v907 = vpack.c.b16 %v661, %v659
      %v908 = vpack.c.b16 %v662, %v660
      %v909 = vpack.c.b16 %v665, %v663
      %v910 = vpack.c.b16 %v666, %v664
      %v911 = vpack.c.b16 %v669, %v667
      %v912 = vpack.c.b16 %v670, %v668
      %v913 = vpack.c.b16 %v673, %v671
      %v914 = vpack.c.b16 %v674, %v672
      %v915 = vpack.c.b16 %v677, %v675
      %v916 = vpack.c.b16 %v678, %v676
      %v917 = vpack.c.b16 %v681, %v679
      %v918 = vpack.c.b16 %v682, %v680
      %v919 = vpack.c.b16 %v685, %v683
      %v920 = vpack.c.b16 %v686, %v684
      %v921 = vpack.c.b16 %v689, %v687
      %v922 = vpack.c.b16 %v690, %v688
      %v923 = vpack.c.b16 %v693, %v691
      %v924 = vpack.c.b16 %v694, %v692
      %v925 = vpack.c.b16 %v697, %v695
      %v926 = vpack.c.b16 %v698, %v696
      %v927 = vpack.c.b16 %v701, %v699
      %v928 = vpack.c.b16 %v702, %v700
      %v929 = vpack.c.b16 %v705, %v703
      %v930 = vpack.c.b16 %v706, %v704
      %v931 = vpack.c.b16 %v709, %v707
      %v932 = vpack.c.b16 %v710, %v708
      %v933 = vpack.c.b16 %v713, %v711
      %v934 = vpack.c.b16 %v714, %v712
      %v935 = vpack.c.b16 %v717, %v715
      %v936 = vpack.c.b16 %v718, %v716
      %v937 = vpack.c.b16 %v721, %v719
      %v938 = vpack.c.b16 %v722, %v720
      %v939 = vpack.c.b16 %v725, %v723
      %v940 = vpack.c.b16 %v726, %v724
      %v941 = vpack.c.b16 %v729, %v727
      %v942 = vpack.c.b16 %v730, %v728
      %v943 = vpack.c.b16 %v733, %v731
      %v944 = vpack.c.b16 %v734, %v732
      %v945 = vpack.c.b16 %v737, %v735
      %v946 = vpack.c.b16 %v738, %v736
      %v947 = vpack.c.b16 %v741, %v739
      %v948 = vpack.c.b16 %v742, %v740
      %v949 = vpack.c.b16 %v745, %v743
      %v950 = vpack.c.b16 %v746, %v744
      %v951 = vpack.c.b16 %v749, %v747
      %v952 = vpack.c.b16 %v750, %v748
      %v953 = vpack.c.b16 %v753, %v751
      %v954 = vpack.c.b16 %v754, %v752
      %v955 = vpack.c.b16 %v757, %v755
      %v956 = vpack.c.b16 %v758, %v756
      %v957 = vpack.c.b16 %v761, %v759
      %v958 = vpack.c.b16 %v762, %v760
      %v959 = vpack.c.b16 %v765, %v763
      %v960 = vpack.c.b16 %v766, %v764
      %v961 = vpack.c.b16 %v769, %v767
      %v962 = vpack.c.b16 %v770, %v768
      %v963 = vpack.c.b16 %v773, %v771
      %v964 = vpack.c.b16 %v774, %v772
      %v965 = vpack.c.b16 %v777, %v775
      %v966 = vpack.c.b16 %v778, %v776
      %v967 = vpack.c.b16 %v781, %v779
      %v968 = vpack.c.b16 %v782, %v780
      %v969 = vpack.c.b16 %v785, %v783
      %v970 = vpack.c.b16 %v786, %v784
      %v971 = vpack.c.b16 %v789, %v787
      %v972 = vpack.c.b16 %v790, %v788
      %v973 = vpack.c.b16 %v793, %v791
      %v974 = vpack.c.b16 %v794, %v792
      %v975 = vpack.c.b16 %v797, %v795
      %v976 = vpack.c.b16 %v798, %v796
      %v977 = vpack.c.b16 %v801, %v799
      %v978 = vpack.c.b16 %v802, %v800
      %v979 = vpack.c.b16 %v805, %v803
      %v980 = vpack.c.b16 %v806, %v804
      %v981 = vpack.c.b16 %v809, %v807
      %v982 = vpack.c.b16 %v810, %v808
      %v983 = vpack.c.b16 %v813, %v811
      %v984 = vpack.c.b16 %v814, %v812
      %v985 = vpack.c.b16 %v817, %v815
      %v986 = vpack.c.b16 %v818, %v816
      %v987 = vpack.c.b16 %v821, %v819
      %v988 = vpack.c.b16 %v822, %v820
      %v989 = vpack.c.b16 %v825, %v823
      %v990 = vpack.c.b16 %v826, %v824
      %v991 = vpack.c.b16 %v829, %v827
      %v992 = vpack.c.b16 %v830, %v828
      %v993 = vpack.c.b16 %v833, %v831
      %v994 = vpack.c.b16 %v834, %v832
      %v995 = vpack.c.b16 %v837, %v835
      %v996 = vpack.c.b16 %v838, %v836
      %v997 = vpack.c.b16 %v841, %v839
      %v998 = vpack.c.b16 %v842, %v840
      %v999 = vpack.c.b16 %v845, %v843
      %v1000 = vpack.c.b16 %v846, %v844
      %v1001 = vpack.c.b16 %v849, %v847
      %v1002 = vpack.c.b16 %v850, %v848
      %v1003 = vpack.c.b16 %v853, %v851
      %v1004 = vpack.c.b16 %v854, %v852
      %v1005 = vpack.c.b16 %v857, %v855
      %v1006 = vpack.c.b16 %v858, %v856
      %v1007 = vpack.c.b16 %v861, %v859
      %v1008 = vpack.c.b16 %v862, %v860
      %v1009 = vpack.c.b16 %v865, %v863
      %v1010 = vpack.c.b16 %v866, %v864
      %1155 = vmatprep.subr.bf16.mxu0 %v868
      %1156 = vmatpush1.bf16.msra.mxu0 %v867
      %1157 = vmatprep.subr.bf16.mxu0 %v870
      %1158 = vmatpush1.bf16.msra.mxu0 %v869
      %1159 = vmatprep.subr.bf16.mxu0 %v872
      %1160 = vmatpush1.bf16.msra.mxu0 %v871
      %1161 = vmatprep.subr.bf16.mxu0 %v874
      %1162 = vmatpush1.bf16.msra.mxu0 %v873
      %1163 = vmatprep.subr.bf16.mxu0 %v876
      %1164 = vmatpush1.bf16.msra.mxu0 %v875
      %1165 = vmatprep.subr.bf16.mxu0 %v878
      %1166 = vmatpush1.bf16.msra.mxu0 %v877
      %1167 = vmatprep.subr.bf16.mxu0 %v880
      %1168 = vmatpush1.bf16.msra.mxu0 %v879
      %1169 = vmatprep.subr.bf16.mxu0 %v882
      %1170 = vmatpush1.bf16.msra.mxu0 %v881
      %1171 = vmatprep.subr.bf16.mxu0 %v884
      %1172 = vmatpush1.bf16.msra.mxu0 %v883
      %1173 = vmatprep.subr.bf16.mxu0 %v886
      %1174 = vmatpush1.bf16.msra.mxu0 %v885
      %1175 = vmatprep.subr.bf16.mxu0 %v888
      %1176 = vmatpush1.bf16.msra.mxu0 %v887
      %1177 = vmatprep.subr.bf16.mxu0 %v890
      %1178 = vmatpush1.bf16.msra.mxu0 %v889
      %1179 = vmatprep.subr.bf16.mxu0 %v892
      %1180 = vmatpush1.bf16.msra.mxu0 %v891
      %1181 = vmatprep.subr.bf16.mxu0 %v894
      %1182 = vmatpush1.bf16.msra.mxu0 %v893
      %1183 = vmatprep.subr.bf16.mxu0 %v896
      %1184 = vmatpush1.bf16.msra.mxu0 %v895
      %1185 = vmatprep.subr.bf16.mxu0 %v898
      %1186 = vmatpush1.bf16.msra.mxu0 %v897
      %1187 = vmatprep.mubr.bf16.mxu0 %v418
      %1188 = vmatmul.mubr.bf16.gmra.mrb[0].mxu0 %v417
      %v1189 = vpop.f32.mrb[0].mxu0
      %v1190 = vadd.f32 0.0, %v1189
      %v1191 = vpop.f32.mrb[0].mxu0
      %v1192 = vadd.f32 0.0, %v1191
      %v1193 = vpop.f32.mrb[0].mxu0
      %v1194 = vpop.f32.mrb[0].mxu0
      %1195 = vdwg.mxu0
      %1196 = vmatprep.subr.bf16.mxu0 %v900
      %1197 = vmatpush1.bf16.msra.mxu0 %v899
      %1198 = vmatprep.subr.bf16.mxu0 %v902
      %1199 = vmatpush1.bf16.msra.mxu0 %v901
      %1200 = vmatprep.subr.bf16.mxu0 %v904
      %1201 = vmatpush1.bf16.msra.mxu0 %v903
      %1202 = vmatprep.subr.bf16.mxu0 %v906
      %1203 = vmatpush1.bf16.msra.mxu0 %v905
      %1204 = vmatprep.subr.bf16.mxu0 %v908
      %1205 = vmatpush1.bf16.msra.mxu0 %v907
      %1206 = vmatprep.subr.bf16.mxu0 %v910
      %1207 = vmatpush1.bf16.msra.mxu0 %v909
      %1208 = vmatprep.subr.bf16.mxu0 %v912
      %1209 = vmatpush1.bf16.msra.mxu0 %v911
      %1210 = vmatprep.subr.bf16.mxu0 %v914
      %1211 = vmatpush1.bf16.msra.mxu0 %v913
      %1212 = vmatprep.subr.bf16.mxu0 %v916
      %1213 = vmatpush1.bf16.msra.mxu0 %v915
      %1214 = vmatprep.subr.bf16.mxu0 %v918
      %1215 = vmatpush1.bf16.msra.mxu0 %v917
      %1216 = vmatprep.subr.bf16.mxu0 %v920
      %1217 = vmatpush1.bf16.msra.mxu0 %v919
      %1218 = vmatprep.subr.bf16.mxu0 %v922
      %1219 = vmatpush1.bf16.msra.mxu0 %v921
      %1220 = vmatprep.subr.bf16.mxu0 %v924
      %1221 = vmatpush1.bf16.msra.mxu0 %v923
      %1222 = vmatprep.subr.bf16.mxu0 %v926
      %1223 = vmatpush1.bf16.msra.mxu0 %v925
      %1224 = vmatprep.subr.bf16.mxu0 %v928
      %1225 = vmatpush1.bf16.msra.mxu0 %v927
      %1226 = vmatprep.subr.bf16.mxu0 %v930
      %1227 = vmatpush1.bf16.msra.mxu0 %v929
      %1228 = vmatprep.mubr.bf16.mxu0 %v420
      %1229 = vmatmul.mubr.bf16.gmra.mrb[0].mxu0 %v419
      %v1230 = vpop.f32.mrb[0].mxu0
      %v1231 = vadd.f32 %v1190, %v1230
      %v1232 = vpop.f32.mrb[0].mxu0
      %v1233 = vadd.f32 %v1192, %v1232
      %v1234 = vpop.f32.mrb[0].mxu0
      %v1235 = vpop.f32.mrb[0].mxu0
      %1236 = vdwg.mxu0
      %1237 = vmatprep.subr.bf16.mxu0 %v932
      %1238 = vmatpush1.bf16.msra.mxu0 %v931
      %1239 = vmatprep.subr.bf16.mxu0 %v934
      %1240 = vmatpush1.bf16.msra.mxu0 %v933
      %1241 = vmatprep.subr.bf16.mxu0 %v936
      %1242 = vmatpush1.bf16.msra.mxu0 %v935
      %1243 = vmatprep.subr.bf16.mxu0 %v938
      %1244 = vmatpush1.bf16.msra.mxu0 %v937
      %1245 = vmatprep.subr.bf16.mxu0 %v940
      %1246 = vmatpush1.bf16.msra.mxu0 %v939
      %1247 = vmatprep.subr.bf16.mxu0 %v942
      %1248 = vmatpush1.bf16.msra.mxu0 %v941
      %1249 = vmatprep.subr.bf16.mxu0 %v944
      %1250 = vmatpush1.bf16.msra.mxu0 %v943
      %1251 = vmatprep.subr.bf16.mxu0 %v946
      %1252 = vmatpush1.bf16.msra.mxu0 %v945
      %1253 = vmatprep.subr.bf16.mxu0 %v948
      %1254 = vmatpush1.bf16.msra.mxu0 %v947
      %1255 = vmatprep.subr.bf16.mxu0 %v950
      %1256 = vmatpush1.bf16.msra.mxu0 %v949
      %1257 = vmatprep.subr.bf16.mxu0 %v952
      %1258 = vmatpush1.bf16.msra.mxu0 %v951
      %1259 = vmatprep.subr.bf16.mxu0 %v954
      %1260 = vmatpush1.bf16.msra.mxu0 %v953
      %1261 = vmatprep.subr.bf16.mxu0 %v956
      %1262 = vmatpush1.bf16.msra.mxu0 %v955
      %1263 = vmatprep.subr.bf16.mxu0 %v958
      %1264 = vmatpush1.bf16.msra.mxu0 %v957
      %1265 = vmatprep.subr.bf16.mxu0 %v960
      %1266 = vmatpush1.bf16.msra.mxu0 %v959
      %1267 = vmatprep.subr.bf16.mxu0 %v962
      %1268 = vmatpush1.bf16.msra.mxu0 %v961
      %1269 = vmatprep.mubr.bf16.mxu0 %v422
      %1270 = vmatmul.mubr.bf16.gmra.mrb[0].mxu0 %v421
      %v1271 = vpop.f32.mrb[0].mxu0
      %v1272 = vadd.f32 %v1231, %v1271
      %v1273 = vpop.f32.mrb[0].mxu0
      %v1274 = vadd.f32 %v1233, %v1273
      %v1275 = vpop.f32.mrb[0].mxu0
      %v1276 = vpop.f32.mrb[0].mxu0
      %1277 = vdwg.mxu0
      %1278 = vmatprep.subr.bf16.mxu0 %v964
      %1279 = vmatpush1.bf16.msra.mxu0 %v963
      %1280 = vmatprep.subr.bf16.mxu0 %v966
      %1281 = vmatpush1.bf16.msra.mxu0 %v965
      %1282 = vmatprep.subr.bf16.mxu0 %v968
      %1283 = vmatpush1.bf16.msra.mxu0 %v967
      %1284 = vmatprep.subr.bf16.mxu0 %v970
      %1285 = vmatpush1.bf16.msra.mxu0 %v969
      %1286 = vmatprep.subr.bf16.mxu0 %v972
      %1287 = vmatpush1.bf16.msra.mxu0 %v971
      %1288 = vmatprep.subr.bf16.mxu0 %v974
      %1289 = vmatpush1.bf16.msra.mxu0 %v973
      %1290 = vmatprep.subr.bf16.mxu0 %v976
      %1291 = vmatpush1.bf16.msra.mxu0 %v975
      %1292 = vmatprep.subr.bf16.mxu0 %v978
      %1293 = vmatpush1.bf16.msra.mxu0 %v977
      %1294 = vmatprep.subr.bf16.mxu0 %v980
      %1295 = vmatpush1.bf16.msra.mxu0 %v979
      %1296 = vmatprep.subr.bf16.mxu0 %v982
      %1297 = vmatpush1.bf16.msra.mxu0 %v981
      %1298 = vmatprep.subr.bf16.mxu0 %v984
      %1299 = vmatpush1.bf16.msra.mxu0 %v983
      %1300 = vmatprep.subr.bf16.mxu0 %v986
      %1301 = vmatpush1.bf16.msra.mxu0 %v985
      %1302 = vmatprep.subr.bf16.mxu0 %v988
      %1303 = vmatpush1.bf16.msra.mxu0 %v987
      %1304 = vmatprep.subr.bf16.mxu0 %v990
      %1305 = vmatpush1.bf16.msra.mxu0 %v989
      %1306 = vmatprep.subr.bf16.mxu0 %v992
      %1307 = vmatpush1.bf16.msra.mxu0 %v991
      %1308 = vmatprep.subr.bf16.mxu0 %v994
      %1309 = vmatpush1.bf16.msra.mxu0 %v993
      %1310 = vmatprep.mubr.bf16.mxu0 %v424
      %1311 = vmatmul.mubr.bf16.gmra.mrb[0].mxu0 %v423
      %v1312 = vpop.f32.mrb[0].mxu0
      %v1313 = vadd.f32 %v1272, %v1312
      %v1314 = vpop.f32.mrb[0].mxu0
      %v1315 = vadd.f32 %v1274, %v1314
      %v1316 = vpop.f32.mrb[0].mxu0
      %v1317 = vpop.f32.mrb[0].mxu0
      %1318 = vdwg.mxu0
      %1319 = vmatprep.subr.bf16.mxu0 %v996
      %1320 = vmatpush1.bf16.msra.mxu0 %v995
      %1321 = vmatprep.subr.bf16.mxu0 %v998
      %1322 = vmatpush1.bf16.msra.mxu0 %v997
      %1323 = vmatprep.subr.bf16.mxu0 %v1000
      %1324 = vmatpush1.bf16.msra.mxu0 %v999
      %1325 = vmatprep.subr.bf16.mxu0 %v1002
      %1326 = vmatpush1.bf16.msra.mxu0 %v1001
      %1327 = vmatprep.subr.bf16.mxu0 %v1004
      %1328 = vmatpush1.bf16.msra.mxu0 %v1003
      %1329 = vmatprep.subr.bf16.mxu0 %v1006
      %1330 = vmatpush1.bf16.msra.mxu0 %v1005
      %1331 = vmatprep.subr.bf16.mxu0 %v1008
      %1332 = vmatpush1.bf16.msra.mxu0 %v1007
      %1333 = vmatprep.subr.bf16.mxu0 %v1010
      %1334 = vmatpush1.bf16.msra.mxu0 %v1009
      %1335 = vmatprep.subr.bf16.mxu0 0
      %1336 = vmatpush1.bf16.msra.mxu0 0
      %1337 = vmatprep.subr.bf16.mxu0 0
      %1338 = vmatpush1.bf16.msra.mxu0 0
      %1339 = vmatprep.subr.bf16.mxu0 0
      %1340 = vmatpush1.bf16.msra.mxu0 0
      %1341 = vmatprep.subr.bf16.mxu0 0
      %1342 = vmatpush1.bf16.msra.mxu0 0
      %1343 = vmatprep.subr.bf16.mxu0 0
      %1344 = vmatpush1.bf16.msra.mxu0 0
      %1345 = vmatprep.subr.bf16.mxu0 0
      %1346 = vmatpush1.bf16.msra.mxu0 0
      %1347 = vmatprep.subr.bf16.mxu0 0
      %1348 = vmatpush1.bf16.msra.mxu0 0
      %1349 = vmatprep.subr.bf16.mxu0 0
      %1350 = vmatpush1.bf16.msra.mxu0 0
      %1351 = vmatprep.mubr.bf16.mxu0 0
      %1352 = vmatmul.mubr.bf16.gmra.mrb[0].mxu0 %v425
      %v1353 = vpop.f32.mrb[0].mxu0
      %v1354 = vadd.f32 %v1313, %v1353
      %v1355 = vpop.f32.mrb[0].mxu0
      %v1356 = vadd.f32 %v1315, %v1355
      %v1357 = vpop.f32.mrb[0].mxu0
      %v1358 = vpop.f32.mrb[0].mxu0
      %1359 = vdwg.mxu0
      %v1360 = vpack.c.bf16 %v1354, %v1354
      %v1361 = vpack.c.bf16 %v1356, %v1356
      %v1364 = vunpack.c.l.b16 %v1360
      %v1365 = vunpack.c.l.b16 %v1361
      %v1366 = vpack.c.b16 %v1365, %v1364
      %1368 = vst [vmem:[%s233] sm:$0xff] %v1366
      %v1369 = vld [vmem:[%s238] sm:$0x3]
      %v1370 = vrot.slane %v1354, 4
      %v1371 = vadd.f32 %v1354, %v1370
      %v1372 = vrot.slane %v1371, 2
      %v1373 = vadd.f32 %v1371, %v1372
      %v1374 = vrot.slane %v1373, 1
      %v1375 = vadd.f32 %v1373, %v1374
      %v1376 = vrot.slane %v1356, 4
      %v1377 = vadd.f32 %v1356, %v1376
      %v1378 = vrot.slane %v1377, 2
      %v1379 = vadd.f32 %v1377, %v1378
      %v1380 = vrot.slane %v1379, 1
      %v1381 = vadd.f32 %v1379, %v1380
      %v1384 = vcombine.low %v1375, %v1381
      %v1386 = vunpack.c.l.s4 1966171168
      %v1387 = vunpack.c.0.s8 %v1386
      %v1388 = vlaneseq
      %v1389 = vshrl.u32 %v1388, 7
      %v1390 = vsub.s32 %v1387, %v1389
      %v1391 = vrot.slane %v1384, %v1390
      %v1393 = vunpack.c.l.s4 1966171168
      %v1394 = vunpack.c.0.s8 %v1393
      %v1395 = vlaneseq
      %v1396 = vshrl.u32 %v1395, 7
      %v1397 = vsub.s32 %v1394, %v1396
      %v1398 = vrot.slane %v1391, %v1397
      %v1400 = vadd.f32 %v1369, %v1398
      %v1401 = vlaneseq
      %vm1402 = vcmp.ge.s32.totalorder %v1401, 0
      %vm1403 = vcmp.lt.s32.totalorder %v1401, 256
      %vm1404 = vmand %vm1402, %vm1403
      %1405 = vst.msk [vmem:[%s238] sm:$0x3] %vm1404, %v1400
      %v1406 = vld [vmem:[%s242] sm:$0x3]
      %v1407 = vmul.f32 %v1354, %v1354
      %v1408 = vmul.f32 %v1356, %v1356
      %v1409 = vrot.slane %v1407, 4
      %v1410 = vadd.f32 %v1407, %v1409
      %v1411 = vrot.slane %v1410, 2
      %v1412 = vadd.f32 %v1410, %v1411
      %v1413 = vrot.slane %v1412, 1
      %v1414 = vadd.f32 %v1412, %v1413
      %v1415 = vrot.slane %v1408, 4
      %v1416 = vadd.f32 %v1408, %v1415
      %v1417 = vrot.slane %v1416, 2
      %v1418 = vadd.f32 %v1416, %v1417
      %v1419 = vrot.slane %v1418, 1
      %v1420 = vadd.f32 %v1418, %v1419
      %v1423 = vcombine.low %v1414, %v1420
      %v1425 = vunpack.c.l.s4 1966171168
      %v1426 = vunpack.c.0.s8 %v1425
      %v1427 = vlaneseq
      %v1428 = vshrl.u32 %v1427, 7
      %v1429 = vsub.s32 %v1426, %v1428
      %v1430 = vrot.slane %v1423, %v1429
      %v1432 = vunpack.c.l.s4 1966171168
      %v1433 = vunpack.c.0.s8 %v1432
      %v1434 = vlaneseq
      %v1435 = vshrl.u32 %v1434, 7
      %v1436 = vsub.s32 %v1433, %v1435
      %v1437 = vrot.slane %v1430, %v1436
      %v1439 = vadd.f32 %v1406, %v1437
      %1440 = vst.msk [vmem:[%s242] sm:$0x3] %vm1404, %v1439
      %s1441 = sadd.s32 %s20, %s21
      %p1442 = scmp.lt.s32.totalorder %s1441, 1
      %s1443 = scalar_select %p1442, %s1441, 1
      %s1444 = smul.addr %s1443, 2
      %s1445 = smul.addr %s1444, 4
      %s1446 = scalar_lea.vmem %s2, %s1445
      %p1447 = scmp.lt.s32.totalorder %s20, 1
      %s1448 = scalar_select %p1447, %s20, 1
      %s1449 = smul.addr %s1448, 2
      %s1450 = scalar_lea.vmem %s3, %s1449
      %p1451 = scmp.lt.s32.totalorder %s20, 1
      %s1452 = scalar_select %p1451, %s20, 1
      %s1453 = smul.addr %s1452, 2
      %s1454 = scalar_lea.vmem %s4, %s1453
      // Predicated region
      $region33: #{blocks_forward.2} parent=27 // pred_check
        %p1455 = pneg %p97
      $region34: #{blocks_forward.2} parent=27 // pred_check_branch
        %1457 = sbr.rel (%p1455) target = $region36
      $region35: #{blocks_forward.2} parent=27 // pred_region
        %s1458 = sadd.s32 %s20, %s21
      $region36: #{blocks_forward.2} parent=27 // pred_fallthru
        _
      // Predicated region
      $region37: #{blocks_forward.2} parent=27 // pred_check
        %p1459 = pneg %p123
      $region38: #{blocks_forward.2} parent=27 // pred_check_branch
        %1461 = sbr.rel (%p1459) target = $region40
      $region39: #{blocks_forward.2} parent=27 // pred_region
        _
      $region40: #{blocks_forward.2} parent=27 // pred_fallthru
        _
      // Predicated region
      $region41: #{blocks_forward.2} parent=27 // pred_check
        %p1462 = pneg %p149
      $region42: #{blocks_forward.2} parent=27 // pred_check_branch
        %1464 = sbr.rel (%p1462) target = $region44
      $region43: #{blocks_forward.2} parent=27 // pred_region
        _
      $region44: #{blocks_forward.2} parent=27 // pred_fallthru
        _
    $region28: #{blocks_forward.2} parent=5 // pred_fallthru
      _
    %p1465 = scmp.le.s32.totalorder 2, %s11
    // Predicated region
    $region45: #{blocks_forward.2} parent=5 // pred_check
      %p1466 = pneg %p1465
    $region46: #{blocks_forward.2} parent=5 // pred_check_branch
      %1468 = sbr.rel (%p1466) target = $region48
    $region47: #{blocks_forward.2} parent=5 // pred_region
      %s1469 = ssub.s32 %s11, 2
      // Predicated region
      $region49: #{blocks_forward.2} parent=47 // pred_check
        %p1470 = pneg %p103
      $region50: #{blocks_forward.2} parent=47 // pred_check_branch
        %1472 = sbr.rel (%p1470) target = $region52
      $region51: #{blocks_forward.2} parent=47 // pred_region
        %s1473 = sadd.s32 %s22, %s23
        %p1474 = scmp.lt.s32.totalorder %s1473, 1
        %s1475 = scalar_select %p1474, %s1473, 1
        %s1476 = smul.addr %s1475, 2
        %s1477 = smul.addr %s1476, 4
        %s1478 = scalar_lea.vmem %s2, %s1477
      $region52: #{blocks_forward.2} parent=47 // pred_fallthru
        _
      // Predicated region
      $region53: #{blocks_forward.2} parent=47 // pred_check
        %p1479 = pneg %p129
      $region54: #{blocks_forward.2} parent=47 // pred_check_branch
        %1481 = sbr.rel (%p1479) target = $region56
      $region55: #{blocks_forward.2} parent=47 // pred_region
        %p1482 = scmp.lt.s32.totalorder %s22, 1
        %s1483 = scalar_select %p1482, %s22, 1
        %s1484 = smul.addr %s1483, 2
        %s1485 = scalar_lea.vmem %s3, %s1484
      $region56: #{blocks_forward.2} parent=47 // pred_fallthru
        _
      // Predicated region
      $region57: #{blocks_forward.2} parent=47 // pred_check
        %p1486 = pneg %p155
      $region58: #{blocks_forward.2} parent=47 // pred_check_branch
        %1488 = sbr.rel (%p1486) target = $region60
      $region59: #{blocks_forward.2} parent=47 // pred_region
        %p1489 = scmp.lt.s32.totalorder %s22, 1
        %s1490 = scalar_select %p1489, %s22, 1
        %s1491 = smul.addr %s1490, 2
        %s1492 = scalar_lea.vmem %s4, %s1491
      $region60: #{blocks_forward.2} parent=47 // pred_fallthru
        _
    $region48: #{blocks_forward.2} parent=5 // pred_fallthru
      _
  $region6: #{blocks_forward.2} parent=0 // loop_footer
    %s15 = sadd.s32 1, %s11
  $region7: #{blocks_forward.2} parent=0 // loop_footer_branch
    %10 = sbr.rel target = $region3
  $region8: #{blocks_forward.2} parent=0 // loop_exit
    _

</llo_original>
